<compile_context>
chip_gen: v5e
topology: v5e:2x2
jax: 0.10.0
libtpu: 0.0.40
codegen_flags: <defaults>
</compile_context>

<pallas_src>
import functools

import jax
import jax.numpy as jnp
from jax.experimental import pallas as pl
from jax.experimental.pallas import tpu as pltpu

LANE = 128
VMEM_BUDGET = 24 * 1024 * 1024  # stay well below v7x's 32 MiB scoped default


def head_kernel(x_ref, w_ref, b_ref, o_ref, *, inv_hw):
    """relu -> global average pool -> fused (fc_0 | fc_00) matmul.

    x_ref : (B, C, HW)   f32   input features (whole batch, one block)
    w_ref : (C, 2*Npad)  bf16  [w_fc0 | w_fc00], lane-padded, pre-cast once
    b_ref : (1, 2*Npad)  f32   [b_fc0 | b_fc00], lane-padded
    o_ref : (B, 2*Npad)  f32   lane-dense output (real columns sliced outside)
    """
    # self.relu(x): the trunk between this ReLU and the pool is not
    # implemented (module-level TODO), so the ReLU feeds the pool directly.
    h = jnp.maximum(x_ref[...], 0.0)                       # f32, VPU
    # AdaptiveAvgPool2d((1,1)) + flatten == mean over the spatial axis.
    pooled = jnp.sum(h, axis=-1) * inv_hw                  # (B, C) f32
    # Both Linear heads share the pooled input -> one lane-dense MXU matmul
    # over the concatenated weights (bf16 operands, f32 accumulation).
    out = jnp.dot(pooled.astype(jnp.bfloat16), w_ref[...],
                  preferred_element_type=jnp.float32) + b_ref[...]
    o_ref[...] = out


def prepare_params(params, num_classes):
    """One-time parameter prep (hoisted out of the per-call path).

    Zero-pads each head to a multiple of 128 output lanes, concatenates the
    two heads along the output axis and pre-casts the weights to bf16 (halves
    the weight DMA into the kernel).  Call once, reuse the result.
    """
    n_pad = pl.cdiv(num_classes, LANE) * LANE
    pad = n_pad - num_classes
    w = jnp.concatenate([jnp.pad(params["w0"],  ((0, 0), (0, pad))),
                         jnp.pad(params["w00"], ((0, 0), (0, pad)))], axis=1)
    b = jnp.concatenate([jnp.pad(params["b0"],  ((0, 0), (0, pad))),
                         jnp.pad(params["b00"], ((0, 0), (0, pad)))], axis=1)
    return w.astype(jnp.bfloat16), b.astype(jnp.float32)


@functools.partial(jax.jit, static_argnames=("num_classes",))
def forward(x, w, b, *, num_classes):
    """x: (B, C, H, W) f32; w, b: outputs of prepare_params (padded / bf16)."""
    B, C, H, W = x.shape
    hw = H * W
    n2 = w.shape[1]
    n_pad = n2 // 2
    x3 = x.reshape(B, C, hw)                               # free view

    # Guard the single-block design (whole batch resident in VMEM at once).
    footprint = x3.size * 4 + w.size * 2 + b.size * 4 + B * n2 * 4
    assert footprint < VMEM_BUDGET, (
        "head does not fit in VMEM as one block; grid the batch axis (pooling "
        "is per-sample so batch tiling is exact) and mark it "
        "dimension_semantics=('parallel',) to also use both v7x TensorCores")
    # TODO(synk): large-B / v7x deployment should use that gridded variant to
    # regain DMA double-buffering; at the shipped shapes it is pure overhead.

    vmem = pl.BlockSpec(memory_space=pltpu.MemorySpace.VMEM)
    out = pl.pallas_call(
        functools.partial(head_kernel, inv_hw=1.0 / hw),
        out_shape=jax.ShapeDtypeStruct((B, n2), jnp.float32),
        in_specs=[vmem, vmem, vmem],
        out_specs=vmem,
        cost_estimate=pl.CostEstimate(
            flops=2 * B * C * hw + 2 * B * C * n2,
            transcendentals=0,
            bytes_accessed=footprint),
    )(x3, w, b)
    # fc_0 / fc_00 outputs: the real columns of each padded half.
    return out[:, :num_classes], out[:, n_pad:n_pad + num_classes]


def init_params(key, in_features, num_classes):
    """Deterministic synthetic parameters matching torch nn.Linear init.
    Weights are stored transposed relative to torch: (in_features, out)."""
    k0, k00, kb0, kb00 = jax.random.split(key, 4)
    bound = 1.0 / (in_features ** 0.5)

    def lin(kw, kb):
        wgt = jax.random.uniform(kw, (in_features, num_classes), jnp.float32,
                                 -bound, bound)
        bia = jax.random.uniform(kb, (1, num_classes), jnp.float32,
                                 -bound, bound)
        return wgt, bia

    w0, b0 = lin(k0, kb0)
    w00, b00 = lin(k00, kb00)
    return {"w0": w0, "b0": b0, "w00": w00, "b00": b00}


def forward_reference(x, params):
    """Pure-JAX reference of the torch forward (minus the untranslated conv
    trunk), mirroring the kernel's bf16 MXU-operand / f32-accumulation
    precision so a tight tolerance is meaningful.  True fp32 torch output
    differs from this by ~1e-3 relative (bf16 matmul operands)."""
    B, C, H, W = x.shape
    pooled = jnp.mean(jnp.maximum(x, 0.0).reshape(B, C, H * W), axis=-1)
    pb = pooled.astype(jnp.bfloat16)

    def head(wk, bk):
        return jnp.dot(pb, params[wk].astype(jnp.bfloat16),
                       preferred_element_type=jnp.float32) + params[bk]

    return head("w0", "b0"), head("w00", "b00")


if __name__ == "__main__":
    key = jax.random.PRNGKey(0)
    kx, kp = jax.random.split(key)

    # Small shapes consistent with the module: the fc heads take
    # 512 * block.expansion features (expansion=1 -> C=512); num_classes is a
    # constructor arg (default 1000), kept small here.
    B, C, H, W = 2, 512, 8, 8
    NUM_CLASSES = 10

    x = jax.random.normal(kx, (B, C, H, W), jnp.float32)
    params = init_params(kp, in_features=C, num_classes=NUM_CLASSES)

    # One-time parameter prep (pad + concat heads + bf16 cast), reused per call.
    w, b = prepare_params(params, NUM_CLASSES)

    out1, out2 = forward(x, w, b, num_classes=NUM_CLASSES)
    jax.block_until_ready((out1, out2))

    ref1, ref2 = forward_reference(x, params)
    assert out1.shape == (B, NUM_CLASSES), out1.shape
    assert out2.shape == (B, NUM_CLASSES), out2.shape
    assert jnp.allclose(out1, ref1, atol=2e-3, rtol=2e-3), "fc_0 mismatch"
    assert jnp.allclose(out2, ref2, atol=2e-3, rtol=2e-3), "fc_00 mismatch"

    print("KERNEL_OK")
</pallas_src>

<mosaic_0001>
module attributes {stable_mosaic.version = 11 : i64} {
  func.func @head_kernel(%arg0: memref<2x512x64xf32, #tpu.memory_space<vmem>>, %arg1: memref<512x256xbf16, #tpu.memory_space<vmem>>, %arg2: memref<1x256xf32, #tpu.memory_space<vmem>>, %arg3: memref<2x256xf32, #tpu.memory_space<vmem>>) attributes {dimension_semantics = [], scalar_prefetch = 0 : i64, scratch_operands = 0 : i64, tpu.core_type = #tpu.core_type<tc>} {
    %c0 = arith.constant 0 : index
    %c0_0 = arith.constant 0 : index
    %c0_1 = arith.constant 0 : index
    %0 = vector.load %arg0[%c0, %c0_0, %c0_1] : memref<2x512x64xf32, #tpu.memory_space<vmem>>, vector<2x512x64xf32>
    %cst = arith.constant 0.000000e+00 : f32
    %1 = vector.broadcast %cst : f32 to vector<2x512x64xf32>
    %2 = arith.maximumf %0, %1 : vector<2x512x64xf32>
    %cst_2 = arith.constant dense<0.000000e+00> : vector<2x512xf32>
    %3 = vector.multi_reduction <add>, %2, %cst_2 [2] : vector<2x512x64xf32> to vector<2x512xf32>
    %cst_3 = arith.constant 1.562500e-02 : f32
    %4 = vector.broadcast %cst_3 : f32 to vector<2x512xf32>
    %5 = arith.mulf %3, %4 : vector<2x512xf32>
    %6 = arith.truncf %5 : vector<2x512xf32> to vector<2x512xbf16>
    %c0_4 = arith.constant 0 : index
    %c0_5 = arith.constant 0 : index
    %7 = vector.load %arg1[%c0_4, %c0_5] : memref<512x256xbf16, #tpu.memory_space<vmem>>, vector<512x256xbf16>
    %cst_6 = arith.constant dense<0.000000e+00> : vector<2x256xf32>
    %8 = tpu.matmul %6, %7, %cst_6 {dimension_numbers = #tpu.dot_dimension_numbers<[1], [0], [0], [1], [0, 0, 1, 1], [], []>} : vector<2x512xbf16>, vector<512x256xbf16>, vector<2x256xf32> -> vector<2x256xf32>
    %c0_7 = arith.constant 0 : index
    %c0_8 = arith.constant 0 : index
    %9 = vector.load %arg2[%c0_7, %c0_8] : memref<1x256xf32, #tpu.memory_space<vmem>>, vector<1x256xf32>
    %10 = vector.broadcast %9 : vector<1x256xf32> to vector<2x256xf32>
    %11 = arith.addf %8, %10 : vector<2x256xf32>
    %c0_9 = arith.constant 0 : index
    %c0_10 = arith.constant 0 : index
    %12 = vector.load %arg3[%c0_9, %c0_10] : memref<2x256xf32, #tpu.memory_space<vmem>>, vector<2x256xf32>
    tpu.vector_store %arg3[%c0_9, %c0_10], %11 {strides = array<i32>} : memref<2x256xf32, #tpu.memory_space<vmem>>, vector<2x256xf32>,
    return
  }
}

</mosaic_0001>

<llo_original>
// kernel: forward.1
$region0: #{forward.1}
  #allocation0 [shape = 'u32[]', space=smem, size = 0x4, offset = 0x4, fixed_abs, tag = 'smem constant byte address 0x4 - core index']
  #allocation1 [shape = 'u32[72,128]{1,0:T(1,128)}', space=vmem, size = 0x9000, scoped, tag = 'internal scratch']
  %s0 = inlined_call_operand.vmem [shape: f32[2,512,64], index: 0, kind: input, shape index: {}]
  %s1 = inlined_call_operand.vmem [shape: bf16[512,256], index: 1, kind: input, shape index: {}]
  %s2 = inlined_call_operand.vmem [shape: f32[1,256], index: 2, kind: input, shape index: {}]
  %s3 = inlined_call_operand.vmem [shape: f32[2,256], index: 3, kind: output, shape index: {}]
  %s4 = sld [smem:[#allocation0]]
  $region22: #{forward.1} parent=0
    _
  %s6 = ssub.s32 1, %s4
  %s7 = scalar_select 0, %s6, %s4
  // Predicated region
  $region2: #{forward.1} parent=0 // pred_check
    _
  $region3: #{forward.1} parent=0 // pred_check_branch
    %9 = sbr.rel (0) target = $region5
  $region4: #{forward.1} parent=0 // pred_region
    _
  $region5: #{forward.1} parent=0 // pred_fallthru
    _
  // Predicated region
  $region6: #{forward.1} parent=0 // pred_check
    _
  $region7: #{forward.1} parent=0 // pred_check_branch
    %11 = sbr.rel (0) target = $region9
  $region8: #{forward.1} parent=0 // pred_region
    _
  $region9: #{forward.1} parent=0 // pred_fallthru
    _
  // Predicated region
  $region10: #{forward.1} parent=0 // pred_check
    _
  $region11: #{forward.1} parent=0 // pred_check_branch
    %13 = sbr.rel (0) target = $region13
  $region12: #{forward.1} parent=0 // pred_region
    _
  $region13: #{forward.1} parent=0 // pred_fallthru
    _
  %v14 = vld [vmem:[%s0] sm:$0xff]
  %v15 = vld [vmem:[%s0 + $0x8] sm:$0xff]
  %v16 = vld [vmem:[%s0 + $0x10] sm:$0xff]
  %v17 = vld [vmem:[%s0 + $0x18] sm:$0xff]
  %v18 = vld [vmem:[%s0 + $0x20] sm:$0xff]
  %v19 = vld [vmem:[%s0 + $0x28] sm:$0xff]
  %v20 = vld [vmem:[%s0 + $0x30] sm:$0xff]
  %v21 = vld [vmem:[%s0 + $0x38] sm:$0xff]
  %v22 = vld [vmem:[%s0 + $0x40] sm:$0xff]
  %v23 = vld [vmem:[%s0 + $0x48] sm:$0xff]
  %v24 = vld [vmem:[%s0 + $0x50] sm:$0xff]
  %v25 = vld [vmem:[%s0 + $0x58] sm:$0xff]
  %v26 = vld [vmem:[%s0 + $0x60] sm:$0xff]
  %v27 = vld [vmem:[%s0 + $0x68] sm:$0xff]
  %v28 = vld [vmem:[%s0 + $0x70] sm:$0xff]
  %v29 = vld [vmem:[%s0 + $0x78] sm:$0xff]
  %v30 = vld [vmem:[%s0 + $0x80] sm:$0xff]
  %v31 = vld [vmem:[%s0 + $0x88] sm:$0xff]
  %v32 = vld [vmem:[%s0 + $0x90] sm:$0xff]
  %v33 = vld [vmem:[%s0 + $0x98] sm:$0xff]
  %v34 = vld [vmem:[%s0 + $0xa0] sm:$0xff]
  %v35 = vld [vmem:[%s0 + $0xa8] sm:$0xff]
  %v36 = vld [vmem:[%s0 + $0xb0] sm:$0xff]
  %v37 = vld [vmem:[%s0 + $0xb8] sm:$0xff]
  %v38 = vld [vmem:[%s0 + $0xc0] sm:$0xff]
  %v39 = vld [vmem:[%s0 + $0xc8] sm:$0xff]
  %v40 = vld [vmem:[%s0 + $0xd0] sm:$0xff]
  %v41 = vld [vmem:[%s0 + $0xd8] sm:$0xff]
  %v42 = vld [vmem:[%s0 + $0xe0] sm:$0xff]
  %v43 = vld [vmem:[%s0 + $0xe8] sm:$0xff]
  %v44 = vld [vmem:[%s0 + $0xf0] sm:$0xff]
  %v45 = vld [vmem:[%s0 + $0xf8] sm:$0xff]
  %v46 = vld [vmem:[%s0 + $0x100] sm:$0xff]
  %v47 = vld [vmem:[%s0 + $0x108] sm:$0xff]
  %v48 = vld [vmem:[%s0 + $0x110] sm:$0xff]
  %v49 = vld [vmem:[%s0 + $0x118] sm:$0xff]
  %v50 = vld [vmem:[%s0 + $0x120] sm:$0xff]
  %v51 = vld [vmem:[%s0 + $0x128] sm:$0xff]
  %v52 = vld [vmem:[%s0 + $0x130] sm:$0xff]
  %v53 = vld [vmem:[%s0 + $0x138] sm:$0xff]
  %v54 = vld [vmem:[%s0 + $0x140] sm:$0xff]
  %v55 = vld [vmem:[%s0 + $0x148] sm:$0xff]
  %v56 = vld [vmem:[%s0 + $0x150] sm:$0xff]
  %v57 = vld [vmem:[%s0 + $0x158] sm:$0xff]
  %v58 = vld [vmem:[%s0 + $0x160] sm:$0xff]
  %v59 = vld [vmem:[%s0 + $0x168] sm:$0xff]
  %v60 = vld [vmem:[%s0 + $0x170] sm:$0xff]
  %v61 = vld [vmem:[%s0 + $0x178] sm:$0xff]
  %v62 = vld [vmem:[%s0 + $0x180] sm:$0xff]
  %v63 = vld [vmem:[%s0 + $0x188] sm:$0xff]
  %v64 = vld [vmem:[%s0 + $0x190] sm:$0xff]
  %v65 = vld [vmem:[%s0 + $0x198] sm:$0xff]
  %v66 = vld [vmem:[%s0 + $0x1a0] sm:$0xff]
  %v67 = vld [vmem:[%s0 + $0x1a8] sm:$0xff]
  %v68 = vld [vmem:[%s0 + $0x1b0] sm:$0xff]
  %v69 = vld [vmem:[%s0 + $0x1b8] sm:$0xff]
  %v70 = vld [vmem:[%s0 + $0x1c0] sm:$0xff]
  %v71 = vld [vmem:[%s0 + $0x1c8] sm:$0xff]
  %v72 = vld [vmem:[%s0 + $0x1d0] sm:$0xff]
  %v73 = vld [vmem:[%s0 + $0x1d8] sm:$0xff]
  %v74 = vld [vmem:[%s0 + $0x1e0] sm:$0xff]
  %v75 = vld [vmem:[%s0 + $0x1e8] sm:$0xff]
  %v76 = vld [vmem:[%s0 + $0x1f0] sm:$0xff]
  %v77 = vld [vmem:[%s0 + $0x1f8] sm:$0xff]
  %v78 = vld [vmem:[%s0 + $0x200] sm:$0xff]
  %v79 = vld [vmem:[%s0 + $0x208] sm:$0xff]
  %v80 = vld [vmem:[%s0 + $0x210] sm:$0xff]
  %v81 = vld [vmem:[%s0 + $0x218] sm:$0xff]
  %v82 = vld [vmem:[%s0 + $0x220] sm:$0xff]
  %v83 = vld [vmem:[%s0 + $0x228] sm:$0xff]
  %v84 = vld [vmem:[%s0 + $0x230] sm:$0xff]
  %v85 = vld [vmem:[%s0 + $0x238] sm:$0xff]
  %v86 = vld [vmem:[%s0 + $0x240] sm:$0xff]
  %v87 = vld [vmem:[%s0 + $0x248] sm:$0xff]
  %v88 = vld [vmem:[%s0 + $0x250] sm:$0xff]
  %v89 = vld [vmem:[%s0 + $0x258] sm:$0xff]
  %v90 = vld [vmem:[%s0 + $0x260] sm:$0xff]
  %v91 = vld [vmem:[%s0 + $0x268] sm:$0xff]
  %v92 = vld [vmem:[%s0 + $0x270] sm:$0xff]
  %v93 = vld [vmem:[%s0 + $0x278] sm:$0xff]
  %v94 = vld [vmem:[%s0 + $0x280] sm:$0xff]
  %v95 = vld [vmem:[%s0 + $0x288] sm:$0xff]
  %v96 = vld [vmem:[%s0 + $0x290] sm:$0xff]
  %v97 = vld [vmem:[%s0 + $0x298] sm:$0xff]
  %v98 = vld [vmem:[%s0 + $0x2a0] sm:$0xff]
  %v99 = vld [vmem:[%s0 + $0x2a8] sm:$0xff]
  %v100 = vld [vmem:[%s0 + $0x2b0] sm:$0xff]
  %v101 = vld [vmem:[%s0 + $0x2b8] sm:$0xff]
  %v102 = vld [vmem:[%s0 + $0x2c0] sm:$0xff]
  %v103 = vld [vmem:[%s0 + $0x2c8] sm:$0xff]
  %v104 = vld [vmem:[%s0 + $0x2d0] sm:$0xff]
  %v105 = vld [vmem:[%s0 + $0x2d8] sm:$0xff]
  %v106 = vld [vmem:[%s0 + $0x2e0] sm:$0xff]
  %v107 = vld [vmem:[%s0 + $0x2e8] sm:$0xff]
  %v108 = vld [vmem:[%s0 + $0x2f0] sm:$0xff]
  %v109 = vld [vmem:[%s0 + $0x2f8] sm:$0xff]
  %v110 = vld [vmem:[%s0 + $0x300] sm:$0xff]
  %v111 = vld [vmem:[%s0 + $0x308] sm:$0xff]
  %v112 = vld [vmem:[%s0 + $0x310] sm:$0xff]
  %v113 = vld [vmem:[%s0 + $0x318] sm:$0xff]
  %v114 = vld [vmem:[%s0 + $0x320] sm:$0xff]
  %v115 = vld [vmem:[%s0 + $0x328] sm:$0xff]
  %v116 = vld [vmem:[%s0 + $0x330] sm:$0xff]
  %v117 = vld [vmem:[%s0 + $0x338] sm:$0xff]
  %v118 = vld [vmem:[%s0 + $0x340] sm:$0xff]
  %v119 = vld [vmem:[%s0 + $0x348] sm:$0xff]
  %v120 = vld [vmem:[%s0 + $0x350] sm:$0xff]
  %v121 = vld [vmem:[%s0 + $0x358] sm:$0xff]
  %v122 = vld [vmem:[%s0 + $0x360] sm:$0xff]
  %v123 = vld [vmem:[%s0 + $0x368] sm:$0xff]
  %v124 = vld [vmem:[%s0 + $0x370] sm:$0xff]
  %v125 = vld [vmem:[%s0 + $0x378] sm:$0xff]
  %v126 = vld [vmem:[%s0 + $0x380] sm:$0xff]
  %v127 = vld [vmem:[%s0 + $0x388] sm:$0xff]
  %v128 = vld [vmem:[%s0 + $0x390] sm:$0xff]
  %v129 = vld [vmem:[%s0 + $0x398] sm:$0xff]
  %v130 = vld [vmem:[%s0 + $0x3a0] sm:$0xff]
  %v131 = vld [vmem:[%s0 + $0x3a8] sm:$0xff]
  %v132 = vld [vmem:[%s0 + $0x3b0] sm:$0xff]
  %v133 = vld [vmem:[%s0 + $0x3b8] sm:$0xff]
  %v134 = vld [vmem:[%s0 + $0x3c0] sm:$0xff]
  %v135 = vld [vmem:[%s0 + $0x3c8] sm:$0xff]
  %v136 = vld [vmem:[%s0 + $0x3d0] sm:$0xff]
  %v137 = vld [vmem:[%s0 + $0x3d8] sm:$0xff]
  %v138 = vld [vmem:[%s0 + $0x3e0] sm:$0xff]
  %v139 = vld [vmem:[%s0 + $0x3e8] sm:$0xff]
  %v140 = vld [vmem:[%s0 + $0x3f0] sm:$0xff]
  %v141 = vld [vmem:[%s0 + $0x3f8] sm:$0xff]
  %v142 = vmax.f32 %v14, 0.0
  %v143 = vmax.f32 %v15, 0.0
  %v144 = vmax.f32 %v16, 0.0
  %v145 = vmax.f32 %v17, 0.0
  %v146 = vmax.f32 %v18, 0.0
  %v147 = vmax.f32 %v19, 0.0
  %v148 = vmax.f32 %v20, 0.0
  %v149 = vmax.f32 %v21, 0.0
  %v150 = vmax.f32 %v22, 0.0
  %v151 = vmax.f32 %v23, 0.0
  %v152 = vmax.f32 %v24, 0.0
  %v153 = vmax.f32 %v25, 0.0
  %v154 = vmax.f32 %v26, 0.0
  %v155 = vmax.f32 %v27, 0.0
  %v156 = vmax.f32 %v28, 0.0
  %v157 = vmax.f32 %v29, 0.0
  %v158 = vmax.f32 %v30, 0.0
  %v159 = vmax.f32 %v31, 0.0
  %v160 = vmax.f32 %v32, 0.0
  %v161 = vmax.f32 %v33, 0.0
  %v162 = vmax.f32 %v34, 0.0
  %v163 = vmax.f32 %v35, 0.0
  %v164 = vmax.f32 %v36, 0.0
  %v165 = vmax.f32 %v37, 0.0
  %v166 = vmax.f32 %v38, 0.0
  %v167 = vmax.f32 %v39, 0.0
  %v168 = vmax.f32 %v40, 0.0
  %v169 = vmax.f32 %v41, 0.0
  %v170 = vmax.f32 %v42, 0.0
  %v171 = vmax.f32 %v43, 0.0
  %v172 = vmax.f32 %v44, 0.0
  %v173 = vmax.f32 %v45, 0.0
  %v174 = vmax.f32 %v46, 0.0
  %v175 = vmax.f32 %v47, 0.0
  %v176 = vmax.f32 %v48, 0.0
  %v177 = vmax.f32 %v49, 0.0
  %v178 = vmax.f32 %v50, 0.0
  %v179 = vmax.f32 %v51, 0.0
  %v180 = vmax.f32 %v52, 0.0
  %v181 = vmax.f32 %v53, 0.0
  %v182 = vmax.f32 %v54, 0.0
  %v183 = vmax.f32 %v55, 0.0
  %v184 = vmax.f32 %v56, 0.0
  %v185 = vmax.f32 %v57, 0.0
  %v186 = vmax.f32 %v58, 0.0
  %v187 = vmax.f32 %v59, 0.0
  %v188 = vmax.f32 %v60, 0.0
  %v189 = vmax.f32 %v61, 0.0
  %v190 = vmax.f32 %v62, 0.0
  %v191 = vmax.f32 %v63, 0.0
  %v192 = vmax.f32 %v64, 0.0
  %v193 = vmax.f32 %v65, 0.0
  %v194 = vmax.f32 %v66, 0.0
  %v195 = vmax.f32 %v67, 0.0
  %v196 = vmax.f32 %v68, 0.0
  %v197 = vmax.f32 %v69, 0.0
  %v198 = vmax.f32 %v70, 0.0
  %v199 = vmax.f32 %v71, 0.0
  %v200 = vmax.f32 %v72, 0.0
  %v201 = vmax.f32 %v73, 0.0
  %v202 = vmax.f32 %v74, 0.0
  %v203 = vmax.f32 %v75, 0.0
  %v204 = vmax.f32 %v76, 0.0
  %v205 = vmax.f32 %v77, 0.0
  %v206 = vmax.f32 %v78, 0.0
  %v207 = vmax.f32 %v79, 0.0
  %v208 = vmax.f32 %v80, 0.0
  %v209 = vmax.f32 %v81, 0.0
  %v210 = vmax.f32 %v82, 0.0
  %v211 = vmax.f32 %v83, 0.0
  %v212 = vmax.f32 %v84, 0.0
  %v213 = vmax.f32 %v85, 0.0
  %v214 = vmax.f32 %v86, 0.0
  %v215 = vmax.f32 %v87, 0.0
  %v216 = vmax.f32 %v88, 0.0
  %v217 = vmax.f32 %v89, 0.0
  %v218 = vmax.f32 %v90, 0.0
  %v219 = vmax.f32 %v91, 0.0
  %v220 = vmax.f32 %v92, 0.0
  %v221 = vmax.f32 %v93, 0.0
  %v222 = vmax.f32 %v94, 0.0
  %v223 = vmax.f32 %v95, 0.0
  %v224 = vmax.f32 %v96, 0.0
  %v225 = vmax.f32 %v97, 0.0
  %v226 = vmax.f32 %v98, 0.0
  %v227 = vmax.f32 %v99, 0.0
  %v228 = vmax.f32 %v100, 0.0
  %v229 = vmax.f32 %v101, 0.0
  %v230 = vmax.f32 %v102, 0.0
  %v231 = vmax.f32 %v103, 0.0
  %v232 = vmax.f32 %v104, 0.0
  %v233 = vmax.f32 %v105, 0.0
  %v234 = vmax.f32 %v106, 0.0
  %v235 = vmax.f32 %v107, 0.0
  %v236 = vmax.f32 %v108, 0.0
  %v237 = vmax.f32 %v109, 0.0
  %v238 = vmax.f32 %v110, 0.0
  %v239 = vmax.f32 %v111, 0.0
  %v240 = vmax.f32 %v112, 0.0
  %v241 = vmax.f32 %v113, 0.0
  %v242 = vmax.f32 %v114, 0.0
  %v243 = vmax.f32 %v115, 0.0
  %v244 = vmax.f32 %v116, 0.0
  %v245 = vmax.f32 %v117, 0.0
  %v246 = vmax.f32 %v118, 0.0
  %v247 = vmax.f32 %v119, 0.0
  %v248 = vmax.f32 %v120, 0.0
  %v249 = vmax.f32 %v121, 0.0
  %v250 = vmax.f32 %v122, 0.0
  %v251 = vmax.f32 %v123, 0.0
  %v252 = vmax.f32 %v124, 0.0
  %v253 = vmax.f32 %v125, 0.0
  %v254 = vmax.f32 %v126, 0.0
  %v255 = vmax.f32 %v127, 0.0
  %v256 = vmax.f32 %v128, 0.0
  %v257 = vmax.f32 %v129, 0.0
  %v258 = vmax.f32 %v130, 0.0
  %v259 = vmax.f32 %v131, 0.0
  %v260 = vmax.f32 %v132, 0.0
  %v261 = vmax.f32 %v133, 0.0
  %v262 = vmax.f32 %v134, 0.0
  %v263 = vmax.f32 %v135, 0.0
  %v264 = vmax.f32 %v136, 0.0
  %v265 = vmax.f32 %v137, 0.0
  %v266 = vmax.f32 %v138, 0.0
  %v267 = vmax.f32 %v139, 0.0
  %v268 = vmax.f32 %v140, 0.0
  %v269 = vmax.f32 %v141, 0.0
  %vm270 = vcmask 523264
  %v271 = vsel %vm270, %v142, 0.0
  %272 = vadd.xlane.f32.xlu0 %v271
  %v273 = vpop.xlane.xlu0 %272
  %v274 = vsel %vm270, %v143, 0.0
  %275 = vadd.xlane.f32.xlu0 %v274
  %v276 = vpop.xlane.xlu0 %275
  %v277 = vsel %vm270, %v144, 0.0
  %278 = vadd.xlane.f32.xlu0 %v277
  %v279 = vpop.xlane.xlu0 %278
  %v280 = vsel %vm270, %v145, 0.0
  %281 = vadd.xlane.f32.xlu0 %v280
  %v282 = vpop.xlane.xlu0 %281
  %v283 = vsel %vm270, %v146, 0.0
  %284 = vadd.xlane.f32.xlu0 %v283
  %v285 = vpop.xlane.xlu0 %284
  %v286 = vsel %vm270, %v147, 0.0
  %287 = vadd.xlane.f32.xlu0 %v286
  %v288 = vpop.xlane.xlu0 %287
  %v289 = vsel %vm270, %v148, 0.0
  %290 = vadd.xlane.f32.xlu0 %v289
  %v291 = vpop.xlane.xlu0 %290
  %v292 = vsel %vm270, %v149, 0.0
  %293 = vadd.xlane.f32.xlu0 %v292
  %v294 = vpop.xlane.xlu0 %293
  %v295 = vsel %vm270, %v150, 0.0
  %296 = vadd.xlane.f32.xlu0 %v295
  %v297 = vpop.xlane.xlu0 %296
  %v298 = vsel %vm270, %v151, 0.0
  %299 = vadd.xlane.f32.xlu0 %v298
  %v300 = vpop.xlane.xlu0 %299
  %v301 = vsel %vm270, %v152, 0.0
  %302 = vadd.xlane.f32.xlu0 %v301
  %v303 = vpop.xlane.xlu0 %302
  %v304 = vsel %vm270, %v153, 0.0
  %305 = vadd.xlane.f32.xlu0 %v304
  %v306 = vpop.xlane.xlu0 %305
  %v307 = vsel %vm270, %v154, 0.0
  %308 = vadd.xlane.f32.xlu0 %v307
  %v309 = vpop.xlane.xlu0 %308
  %v310 = vsel %vm270, %v155, 0.0
  %311 = vadd.xlane.f32.xlu0 %v310
  %v312 = vpop.xlane.xlu0 %311
  %v313 = vsel %vm270, %v156, 0.0
  %314 = vadd.xlane.f32.xlu0 %v313
  %v315 = vpop.xlane.xlu0 %314
  %v316 = vsel %vm270, %v157, 0.0
  %317 = vadd.xlane.f32.xlu0 %v316
  %v318 = vpop.xlane.xlu0 %317
  %v319 = vsel %vm270, %v158, 0.0
  %320 = vadd.xlane.f32.xlu0 %v319
  %v321 = vpop.xlane.xlu0 %320
  %v322 = vsel %vm270, %v159, 0.0
  %323 = vadd.xlane.f32.xlu0 %v322
  %v324 = vpop.xlane.xlu0 %323
  %v325 = vsel %vm270, %v160, 0.0
  %326 = vadd.xlane.f32.xlu0 %v325
  %v327 = vpop.xlane.xlu0 %326
  %v328 = vsel %vm270, %v161, 0.0
  %329 = vadd.xlane.f32.xlu0 %v328
  %v330 = vpop.xlane.xlu0 %329
  %v331 = vsel %vm270, %v162, 0.0
  %332 = vadd.xlane.f32.xlu0 %v331
  %v333 = vpop.xlane.xlu0 %332
  %v334 = vsel %vm270, %v163, 0.0
  %335 = vadd.xlane.f32.xlu0 %v334
  %v336 = vpop.xlane.xlu0 %335
  %v337 = vsel %vm270, %v164, 0.0
  %338 = vadd.xlane.f32.xlu0 %v337
  %v339 = vpop.xlane.xlu0 %338
  %v340 = vsel %vm270, %v165, 0.0
  %341 = vadd.xlane.f32.xlu0 %v340
  %v342 = vpop.xlane.xlu0 %341
  %v343 = vsel %vm270, %v166, 0.0
  %344 = vadd.xlane.f32.xlu0 %v343
  %v345 = vpop.xlane.xlu0 %344
  %v346 = vsel %vm270, %v167, 0.0
  %347 = vadd.xlane.f32.xlu0 %v346
  %v348 = vpop.xlane.xlu0 %347
  %v349 = vsel %vm270, %v168, 0.0
  %350 = vadd.xlane.f32.xlu0 %v349
  %v351 = vpop.xlane.xlu0 %350
  %v352 = vsel %vm270, %v169, 0.0
  %353 = vadd.xlane.f32.xlu0 %v352
  %v354 = vpop.xlane.xlu0 %353
  %v355 = vsel %vm270, %v170, 0.0
  %356 = vadd.xlane.f32.xlu0 %v355
  %v357 = vpop.xlane.xlu0 %356
  %v358 = vsel %vm270, %v171, 0.0
  %359 = vadd.xlane.f32.xlu0 %v358
  %v360 = vpop.xlane.xlu0 %359
  %v361 = vsel %vm270, %v172, 0.0
  %362 = vadd.xlane.f32.xlu0 %v361
  %v363 = vpop.xlane.xlu0 %362
  %v364 = vsel %vm270, %v173, 0.0
  %365 = vadd.xlane.f32.xlu0 %v364
  %v366 = vpop.xlane.xlu0 %365
  %v367 = vsel %vm270, %v174, 0.0
  %368 = vadd.xlane.f32.xlu0 %v367
  %v369 = vpop.xlane.xlu0 %368
  %v370 = vsel %vm270, %v175, 0.0
  %371 = vadd.xlane.f32.xlu0 %v370
  %v372 = vpop.xlane.xlu0 %371
  %v373 = vsel %vm270, %v176, 0.0
  %374 = vadd.xlane.f32.xlu0 %v373
  %v375 = vpop.xlane.xlu0 %374
  %v376 = vsel %vm270, %v177, 0.0
  %377 = vadd.xlane.f32.xlu0 %v376
  %v378 = vpop.xlane.xlu0 %377
  %v379 = vsel %vm270, %v178, 0.0
  %380 = vadd.xlane.f32.xlu0 %v379
  %v381 = vpop.xlane.xlu0 %380
  %v382 = vsel %vm270, %v179, 0.0
  %383 = vadd.xlane.f32.xlu0 %v382
  %v384 = vpop.xlane.xlu0 %383
  %v385 = vsel %vm270, %v180, 0.0
  %386 = vadd.xlane.f32.xlu0 %v385
  %v387 = vpop.xlane.xlu0 %386
  %v388 = vsel %vm270, %v181, 0.0
  %389 = vadd.xlane.f32.xlu0 %v388
  %v390 = vpop.xlane.xlu0 %389
  %v391 = vsel %vm270, %v182, 0.0
  %392 = vadd.xlane.f32.xlu0 %v391
  %v393 = vpop.xlane.xlu0 %392
  %v394 = vsel %vm270, %v183, 0.0
  %395 = vadd.xlane.f32.xlu0 %v394
  %v396 = vpop.xlane.xlu0 %395
  %v397 = vsel %vm270, %v184, 0.0
  %398 = vadd.xlane.f32.xlu0 %v397
  %v399 = vpop.xlane.xlu0 %398
  %v400 = vsel %vm270, %v185, 0.0
  %401 = vadd.xlane.f32.xlu0 %v400
  %v402 = vpop.xlane.xlu0 %401
  %v403 = vsel %vm270, %v186, 0.0
  %404 = vadd.xlane.f32.xlu0 %v403
  %v405 = vpop.xlane.xlu0 %404
  %v406 = vsel %vm270, %v187, 0.0
  %407 = vadd.xlane.f32.xlu0 %v406
  %v408 = vpop.xlane.xlu0 %407
  %v409 = vsel %vm270, %v188, 0.0
  %410 = vadd.xlane.f32.xlu0 %v409
  %v411 = vpop.xlane.xlu0 %410
  %v412 = vsel %vm270, %v189, 0.0
  %413 = vadd.xlane.f32.xlu0 %v412
  %v414 = vpop.xlane.xlu0 %413
  %v415 = vsel %vm270, %v190, 0.0
  %416 = vadd.xlane.f32.xlu0 %v415
  %v417 = vpop.xlane.xlu0 %416
  %v418 = vsel %vm270, %v191, 0.0
  %419 = vadd.xlane.f32.xlu0 %v418
  %v420 = vpop.xlane.xlu0 %419
  %v421 = vsel %vm270, %v192, 0.0
  %422 = vadd.xlane.f32.xlu0 %v421
  %v423 = vpop.xlane.xlu0 %422
  %v424 = vsel %vm270, %v193, 0.0
  %425 = vadd.xlane.f32.xlu0 %v424
  %v426 = vpop.xlane.xlu0 %425
  %v427 = vsel %vm270, %v194, 0.0
  %428 = vadd.xlane.f32.xlu0 %v427
  %v429 = vpop.xlane.xlu0 %428
  %v430 = vsel %vm270, %v195, 0.0
  %431 = vadd.xlane.f32.xlu0 %v430
  %v432 = vpop.xlane.xlu0 %431
  %v433 = vsel %vm270, %v196, 0.0
  %434 = vadd.xlane.f32.xlu0 %v433
  %v435 = vpop.xlane.xlu0 %434
  %v436 = vsel %vm270, %v197, 0.0
  %437 = vadd.xlane.f32.xlu0 %v436
  %v438 = vpop.xlane.xlu0 %437
  %v439 = vsel %vm270, %v198, 0.0
  %440 = vadd.xlane.f32.xlu0 %v439
  %v441 = vpop.xlane.xlu0 %440
  %v442 = vsel %vm270, %v199, 0.0
  %443 = vadd.xlane.f32.xlu0 %v442
  %v444 = vpop.xlane.xlu0 %443
  %v445 = vsel %vm270, %v200, 0.0
  %446 = vadd.xlane.f32.xlu0 %v445
  %v447 = vpop.xlane.xlu0 %446
  %v448 = vsel %vm270, %v201, 0.0
  %449 = vadd.xlane.f32.xlu0 %v448
  %v450 = vpop.xlane.xlu0 %449
  %v451 = vsel %vm270, %v202, 0.0
  %452 = vadd.xlane.f32.xlu0 %v451
  %v453 = vpop.xlane.xlu0 %452
  %v454 = vsel %vm270, %v203, 0.0
  %455 = vadd.xlane.f32.xlu0 %v454
  %v456 = vpop.xlane.xlu0 %455
  %v457 = vsel %vm270, %v204, 0.0
  %458 = vadd.xlane.f32.xlu0 %v457
  %v459 = vpop.xlane.xlu0 %458
  %v460 = vsel %vm270, %v205, 0.0
  %461 = vadd.xlane.f32.xlu0 %v460
  %v462 = vpop.xlane.xlu0 %461
  %v463 = vsel %vm270, %v206, 0.0
  %464 = vadd.xlane.f32.xlu0 %v463
  %v465 = vpop.xlane.xlu0 %464
  %v466 = vsel %vm270, %v207, 0.0
  %467 = vadd.xlane.f32.xlu0 %v466
  %v468 = vpop.xlane.xlu0 %467
  %v469 = vsel %vm270, %v208, 0.0
  %470 = vadd.xlane.f32.xlu0 %v469
  %v471 = vpop.xlane.xlu0 %470
  %v472 = vsel %vm270, %v209, 0.0
  %473 = vadd.xlane.f32.xlu0 %v472
  %v474 = vpop.xlane.xlu0 %473
  %v475 = vsel %vm270, %v210, 0.0
  %476 = vadd.xlane.f32.xlu0 %v475
  %v477 = vpop.xlane.xlu0 %476
  %v478 = vsel %vm270, %v211, 0.0
  %479 = vadd.xlane.f32.xlu0 %v478
  %v480 = vpop.xlane.xlu0 %479
  %v481 = vsel %vm270, %v212, 0.0
  %482 = vadd.xlane.f32.xlu0 %v481
  %v483 = vpop.xlane.xlu0 %482
  %v484 = vsel %vm270, %v213, 0.0
  %485 = vadd.xlane.f32.xlu0 %v484
  %v486 = vpop.xlane.xlu0 %485
  %v487 = vsel %vm270, %v214, 0.0
  %488 = vadd.xlane.f32.xlu0 %v487
  %v489 = vpop.xlane.xlu0 %488
  %v490 = vsel %vm270, %v215, 0.0
  %491 = vadd.xlane.f32.xlu0 %v490
  %v492 = vpop.xlane.xlu0 %491
  %v493 = vsel %vm270, %v216, 0.0
  %494 = vadd.xlane.f32.xlu0 %v493
  %v495 = vpop.xlane.xlu0 %494
  %v496 = vsel %vm270, %v217, 0.0
  %497 = vadd.xlane.f32.xlu0 %v496
  %v498 = vpop.xlane.xlu0 %497
  %v499 = vsel %vm270, %v218, 0.0
  %500 = vadd.xlane.f32.xlu0 %v499
  %v501 = vpop.xlane.xlu0 %500
  %v502 = vsel %vm270, %v219, 0.0
  %503 = vadd.xlane.f32.xlu0 %v502
  %v504 = vpop.xlane.xlu0 %503
  %v505 = vsel %vm270, %v220, 0.0
  %506 = vadd.xlane.f32.xlu0 %v505
  %v507 = vpop.xlane.xlu0 %506
  %v508 = vsel %vm270, %v221, 0.0
  %509 = vadd.xlane.f32.xlu0 %v508
  %v510 = vpop.xlane.xlu0 %509
  %v511 = vsel %vm270, %v222, 0.0
  %512 = vadd.xlane.f32.xlu0 %v511
  %v513 = vpop.xlane.xlu0 %512
  %v514 = vsel %vm270, %v223, 0.0
  %515 = vadd.xlane.f32.xlu0 %v514
  %v516 = vpop.xlane.xlu0 %515
  %v517 = vsel %vm270, %v224, 0.0
  %518 = vadd.xlane.f32.xlu0 %v517
  %v519 = vpop.xlane.xlu0 %518
  %v520 = vsel %vm270, %v225, 0.0
  %521 = vadd.xlane.f32.xlu0 %v520
  %v522 = vpop.xlane.xlu0 %521
  %v523 = vsel %vm270, %v226, 0.0
  %524 = vadd.xlane.f32.xlu0 %v523
  %v525 = vpop.xlane.xlu0 %524
  %v526 = vsel %vm270, %v227, 0.0
  %527 = vadd.xlane.f32.xlu0 %v526
  %v528 = vpop.xlane.xlu0 %527
  %v529 = vsel %vm270, %v228, 0.0
  %530 = vadd.xlane.f32.xlu0 %v529
  %v531 = vpop.xlane.xlu0 %530
  %v532 = vsel %vm270, %v229, 0.0
  %533 = vadd.xlane.f32.xlu0 %v532
  %v534 = vpop.xlane.xlu0 %533
  %v535 = vsel %vm270, %v230, 0.0
  %536 = vadd.xlane.f32.xlu0 %v535
  %v537 = vpop.xlane.xlu0 %536
  %v538 = vsel %vm270, %v231, 0.0
  %539 = vadd.xlane.f32.xlu0 %v538
  %v540 = vpop.xlane.xlu0 %539
  %v541 = vsel %vm270, %v232, 0.0
  %542 = vadd.xlane.f32.xlu0 %v541
  %v543 = vpop.xlane.xlu0 %542
  %v544 = vsel %vm270, %v233, 0.0
  %545 = vadd.xlane.f32.xlu0 %v544
  %v546 = vpop.xlane.xlu0 %545
  %v547 = vsel %vm270, %v234, 0.0
  %548 = vadd.xlane.f32.xlu0 %v547
  %v549 = vpop.xlane.xlu0 %548
  %v550 = vsel %vm270, %v235, 0.0
  %551 = vadd.xlane.f32.xlu0 %v550
  %v552 = vpop.xlane.xlu0 %551
  %v553 = vsel %vm270, %v236, 0.0
  %554 = vadd.xlane.f32.xlu0 %v553
  %v555 = vpop.xlane.xlu0 %554
  %v556 = vsel %vm270, %v237, 0.0
  %557 = vadd.xlane.f32.xlu0 %v556
  %v558 = vpop.xlane.xlu0 %557
  %v559 = vsel %vm270, %v238, 0.0
  %560 = vadd.xlane.f32.xlu0 %v559
  %v561 = vpop.xlane.xlu0 %560
  %v562 = vsel %vm270, %v239, 0.0
  %563 = vadd.xlane.f32.xlu0 %v562
  %v564 = vpop.xlane.xlu0 %563
  %v565 = vsel %vm270, %v240, 0.0
  %566 = vadd.xlane.f32.xlu0 %v565
  %v567 = vpop.xlane.xlu0 %566
  %v568 = vsel %vm270, %v241, 0.0
  %569 = vadd.xlane.f32.xlu0 %v568
  %v570 = vpop.xlane.xlu0 %569
  %v571 = vsel %vm270, %v242, 0.0
  %572 = vadd.xlane.f32.xlu0 %v571
  %v573 = vpop.xlane.xlu0 %572
  %v574 = vsel %vm270, %v243, 0.0
  %575 = vadd.xlane.f32.xlu0 %v574
  %v576 = vpop.xlane.xlu0 %575
  %v577 = vsel %vm270, %v244, 0.0
  %578 = vadd.xlane.f32.xlu0 %v577
  %v579 = vpop.xlane.xlu0 %578
  %v580 = vsel %vm270, %v245, 0.0
  %581 = vadd.xlane.f32.xlu0 %v580
  %v582 = vpop.xlane.xlu0 %581
  %v583 = vsel %vm270, %v246, 0.0
  %584 = vadd.xlane.f32.xlu0 %v583
  %v585 = vpop.xlane.xlu0 %584
  %v586 = vsel %vm270, %v247, 0.0
  %587 = vadd.xlane.f32.xlu0 %v586
  %v588 = vpop.xlane.xlu0 %587
  %v589 = vsel %vm270, %v248, 0.0
  %590 = vadd.xlane.f32.xlu0 %v589
  %v591 = vpop.xlane.xlu0 %590
  %v592 = vsel %vm270, %v249, 0.0
  %593 = vadd.xlane.f32.xlu0 %v592
  %v594 = vpop.xlane.xlu0 %593
  %v595 = vsel %vm270, %v250, 0.0
  %596 = vadd.xlane.f32.xlu0 %v595
  %v597 = vpop.xlane.xlu0 %596
  %v598 = vsel %vm270, %v251, 0.0
  %599 = vadd.xlane.f32.xlu0 %v598
  %v600 = vpop.xlane.xlu0 %599
  %v601 = vsel %vm270, %v252, 0.0
  %602 = vadd.xlane.f32.xlu0 %v601
  %v603 = vpop.xlane.xlu0 %602
  %v604 = vsel %vm270, %v253, 0.0
  %605 = vadd.xlane.f32.xlu0 %v604
  %v606 = vpop.xlane.xlu0 %605
  %v607 = vsel %vm270, %v254, 0.0
  %608 = vadd.xlane.f32.xlu0 %v607
  %v609 = vpop.xlane.xlu0 %608
  %v610 = vsel %vm270, %v255, 0.0
  %611 = vadd.xlane.f32.xlu0 %v610
  %v612 = vpop.xlane.xlu0 %611
  %v613 = vsel %vm270, %v256, 0.0
  %614 = vadd.xlane.f32.xlu0 %v613
  %v615 = vpop.xlane.xlu0 %614
  %v616 = vsel %vm270, %v257, 0.0
  %617 = vadd.xlane.f32.xlu0 %v616
  %v618 = vpop.xlane.xlu0 %617
  %v619 = vsel %vm270, %v258, 0.0
  %620 = vadd.xlane.f32.xlu0 %v619
  %v621 = vpop.xlane.xlu0 %620
  %v622 = vsel %vm270, %v259, 0.0
  %623 = vadd.xlane.f32.xlu0 %v622
  %v624 = vpop.xlane.xlu0 %623
  %v625 = vsel %vm270, %v260, 0.0
  %626 = vadd.xlane.f32.xlu0 %v625
  %v627 = vpop.xlane.xlu0 %626
  %v628 = vsel %vm270, %v261, 0.0
  %629 = vadd.xlane.f32.xlu0 %v628
  %v630 = vpop.xlane.xlu0 %629
  %v631 = vsel %vm270, %v262, 0.0
  %632 = vadd.xlane.f32.xlu0 %v631
  %v633 = vpop.xlane.xlu0 %632
  %v634 = vsel %vm270, %v263, 0.0
  %635 = vadd.xlane.f32.xlu0 %v634
  %v636 = vpop.xlane.xlu0 %635
  %v637 = vsel %vm270, %v264, 0.0
  %638 = vadd.xlane.f32.xlu0 %v637
  %v639 = vpop.xlane.xlu0 %638
  %v640 = vsel %vm270, %v265, 0.0
  %641 = vadd.xlane.f32.xlu0 %v640
  %v642 = vpop.xlane.xlu0 %641
  %v643 = vsel %vm270, %v266, 0.0
  %644 = vadd.xlane.f32.xlu0 %v643
  %v645 = vpop.xlane.xlu0 %644
  %v646 = vsel %vm270, %v267, 0.0
  %647 = vadd.xlane.f32.xlu0 %v646
  %v648 = vpop.xlane.xlu0 %647
  %v649 = vsel %vm270, %v268, 0.0
  %650 = vadd.xlane.f32.xlu0 %v649
  %v651 = vpop.xlane.xlu0 %650
  %v652 = vsel %vm270, %v269, 0.0
  %653 = vadd.xlane.f32.xlu0 %v652
  %v654 = vpop.xlane.xlu0 %653
  %v655 = vmul.f32 %v273, 0.015625
  %v656 = vmul.f32 %v276, 0.015625
  %v657 = vmul.f32 %v279, 0.015625
  %v658 = vmul.f32 %v282, 0.015625
  %v659 = vmul.f32 %v285, 0.015625
  %v660 = vmul.f32 %v288, 0.015625
  %v661 = vmul.f32 %v291, 0.015625
  %v662 = vmul.f32 %v294, 0.015625
  %v663 = vmul.f32 %v297, 0.015625
  %v664 = vmul.f32 %v300, 0.015625
  %v665 = vmul.f32 %v303, 0.015625
  %v666 = vmul.f32 %v306, 0.015625
  %v667 = vmul.f32 %v309, 0.015625
  %v668 = vmul.f32 %v312, 0.015625
  %v669 = vmul.f32 %v315, 0.015625
  %v670 = vmul.f32 %v318, 0.015625
  %v671 = vmul.f32 %v321, 0.015625
  %v672 = vmul.f32 %v324, 0.015625
  %v673 = vmul.f32 %v327, 0.015625
  %v674 = vmul.f32 %v330, 0.015625
  %v675 = vmul.f32 %v333, 0.015625
  %v676 = vmul.f32 %v336, 0.015625
  %v677 = vmul.f32 %v339, 0.015625
  %v678 = vmul.f32 %v342, 0.015625
  %v679 = vmul.f32 %v345, 0.015625
  %v680 = vmul.f32 %v348, 0.015625
  %v681 = vmul.f32 %v351, 0.015625
  %v682 = vmul.f32 %v354, 0.015625
  %v683 = vmul.f32 %v357, 0.015625
  %v684 = vmul.f32 %v360, 0.015625
  %v685 = vmul.f32 %v363, 0.015625
  %v686 = vmul.f32 %v366, 0.015625
  %v687 = vmul.f32 %v369, 0.015625
  %v688 = vmul.f32 %v372, 0.015625
  %v689 = vmul.f32 %v375, 0.015625
  %v690 = vmul.f32 %v378, 0.015625
  %v691 = vmul.f32 %v381, 0.015625
  %v692 = vmul.f32 %v384, 0.015625
  %v693 = vmul.f32 %v387, 0.015625
  %v694 = vmul.f32 %v390, 0.015625
  %v695 = vmul.f32 %v393, 0.015625
  %v696 = vmul.f32 %v396, 0.015625
  %v697 = vmul.f32 %v399, 0.015625
  %v698 = vmul.f32 %v402, 0.015625
  %v699 = vmul.f32 %v405, 0.015625
  %v700 = vmul.f32 %v408, 0.015625
  %v701 = vmul.f32 %v411, 0.015625
  %v702 = vmul.f32 %v414, 0.015625
  %v703 = vmul.f32 %v417, 0.015625
  %v704 = vmul.f32 %v420, 0.015625
  %v705 = vmul.f32 %v423, 0.015625
  %v706 = vmul.f32 %v426, 0.015625
  %v707 = vmul.f32 %v429, 0.015625
  %v708 = vmul.f32 %v432, 0.015625
  %v709 = vmul.f32 %v435, 0.015625
  %v710 = vmul.f32 %v438, 0.015625
  %v711 = vmul.f32 %v441, 0.015625
  %v712 = vmul.f32 %v444, 0.015625
  %v713 = vmul.f32 %v447, 0.015625
  %v714 = vmul.f32 %v450, 0.015625
  %v715 = vmul.f32 %v453, 0.015625
  %v716 = vmul.f32 %v456, 0.015625
  %v717 = vmul.f32 %v459, 0.015625
  %v718 = vmul.f32 %v462, 0.015625
  %v719 = vmul.f32 %v465, 0.015625
  %v720 = vmul.f32 %v468, 0.015625
  %v721 = vmul.f32 %v471, 0.015625
  %v722 = vmul.f32 %v474, 0.015625
  %v723 = vmul.f32 %v477, 0.015625
  %v724 = vmul.f32 %v480, 0.015625
  %v725 = vmul.f32 %v483, 0.015625
  %v726 = vmul.f32 %v486, 0.015625
  %v727 = vmul.f32 %v489, 0.015625
  %v728 = vmul.f32 %v492, 0.015625
  %v729 = vmul.f32 %v495, 0.015625
  %v730 = vmul.f32 %v498, 0.015625
  %v731 = vmul.f32 %v501, 0.015625
  %v732 = vmul.f32 %v504, 0.015625
  %v733 = vmul.f32 %v507, 0.015625
  %v734 = vmul.f32 %v510, 0.015625
  %v735 = vmul.f32 %v513, 0.015625
  %v736 = vmul.f32 %v516, 0.015625
  %v737 = vmul.f32 %v519, 0.015625
  %v738 = vmul.f32 %v522, 0.015625
  %v739 = vmul.f32 %v525, 0.015625
  %v740 = vmul.f32 %v528, 0.015625
  %v741 = vmul.f32 %v531, 0.015625
  %v742 = vmul.f32 %v534, 0.015625
  %v743 = vmul.f32 %v537, 0.015625
  %v744 = vmul.f32 %v540, 0.015625
  %v745 = vmul.f32 %v543, 0.015625
  %v746 = vmul.f32 %v546, 0.015625
  %v747 = vmul.f32 %v549, 0.015625
  %v748 = vmul.f32 %v552, 0.015625
  %v749 = vmul.f32 %v555, 0.015625
  %v750 = vmul.f32 %v558, 0.015625
  %v751 = vmul.f32 %v561, 0.015625
  %v752 = vmul.f32 %v564, 0.015625
  %v753 = vmul.f32 %v567, 0.015625
  %v754 = vmul.f32 %v570, 0.015625
  %v755 = vmul.f32 %v573, 0.015625
  %v756 = vmul.f32 %v576, 0.015625
  %v757 = vmul.f32 %v579, 0.015625
  %v758 = vmul.f32 %v582, 0.015625
  %v759 = vmul.f32 %v585, 0.015625
  %v760 = vmul.f32 %v588, 0.015625
  %v761 = vmul.f32 %v591, 0.015625
  %v762 = vmul.f32 %v594, 0.015625
  %v763 = vmul.f32 %v597, 0.015625
  %v764 = vmul.f32 %v600, 0.015625
  %v765 = vmul.f32 %v603, 0.015625
  %v766 = vmul.f32 %v606, 0.015625
  %v767 = vmul.f32 %v609, 0.015625
  %v768 = vmul.f32 %v612, 0.015625
  %v769 = vmul.f32 %v615, 0.015625
  %v770 = vmul.f32 %v618, 0.015625
  %v771 = vmul.f32 %v621, 0.015625
  %v772 = vmul.f32 %v624, 0.015625
  %v773 = vmul.f32 %v627, 0.015625
  %v774 = vmul.f32 %v630, 0.015625
  %v775 = vmul.f32 %v633, 0.015625
  %v776 = vmul.f32 %v636, 0.015625
  %v777 = vmul.f32 %v639, 0.015625
  %v778 = vmul.f32 %v642, 0.015625
  %v779 = vmul.f32 %v645, 0.015625
  %v780 = vmul.f32 %v648, 0.015625
  %v781 = vmul.f32 %v651, 0.015625
  %v782 = vmul.f32 %v654, 0.015625
  %v783 = vpack.c.bf16 %v656, %v655
  %v784 = vpack.c.bf16 %v658, %v657
  %v785 = vpack.c.bf16 %v660, %v659
  %v786 = vpack.c.bf16 %v662, %v661
  %v787 = vpack.c.bf16 %v664, %v663
  %v788 = vpack.c.bf16 %v666, %v665
  %v789 = vpack.c.bf16 %v668, %v667
  %v790 = vpack.c.bf16 %v670, %v669
  %v791 = vpack.c.bf16 %v672, %v671
  %v792 = vpack.c.bf16 %v674, %v673
  %v793 = vpack.c.bf16 %v676, %v675
  %v794 = vpack.c.bf16 %v678, %v677
  %v795 = vpack.c.bf16 %v680, %v679
  %v796 = vpack.c.bf16 %v682, %v681
  %v797 = vpack.c.bf16 %v684, %v683
  %v798 = vpack.c.bf16 %v686, %v685
  %v799 = vpack.c.bf16 %v688, %v687
  %v800 = vpack.c.bf16 %v690, %v689
  %v801 = vpack.c.bf16 %v692, %v691
  %v802 = vpack.c.bf16 %v694, %v693
  %v803 = vpack.c.bf16 %v696, %v695
  %v804 = vpack.c.bf16 %v698, %v697
  %v805 = vpack.c.bf16 %v700, %v699
  %v806 = vpack.c.bf16 %v702, %v701
  %v807 = vpack.c.bf16 %v704, %v703
  %v808 = vpack.c.bf16 %v706, %v705
  %v809 = vpack.c.bf16 %v708, %v707
  %v810 = vpack.c.bf16 %v710, %v709
  %v811 = vpack.c.bf16 %v712, %v711
  %v812 = vpack.c.bf16 %v714, %v713
  %v813 = vpack.c.bf16 %v716, %v715
  %v814 = vpack.c.bf16 %v718, %v717
  %v815 = vpack.c.bf16 %v720, %v719
  %v816 = vpack.c.bf16 %v722, %v721
  %v817 = vpack.c.bf16 %v724, %v723
  %v818 = vpack.c.bf16 %v726, %v725
  %v819 = vpack.c.bf16 %v728, %v727
  %v820 = vpack.c.bf16 %v730, %v729
  %v821 = vpack.c.bf16 %v732, %v731
  %v822 = vpack.c.bf16 %v734, %v733
  %v823 = vpack.c.bf16 %v736, %v735
  %v824 = vpack.c.bf16 %v738, %v737
  %v825 = vpack.c.bf16 %v740, %v739
  %v826 = vpack.c.bf16 %v742, %v741
  %v827 = vpack.c.bf16 %v744, %v743
  %v828 = vpack.c.bf16 %v746, %v745
  %v829 = vpack.c.bf16 %v748, %v747
  %v830 = vpack.c.bf16 %v750, %v749
  %v831 = vpack.c.bf16 %v752, %v751
  %v832 = vpack.c.bf16 %v754, %v753
  %v833 = vpack.c.bf16 %v756, %v755
  %v834 = vpack.c.bf16 %v758, %v757
  %v835 = vpack.c.bf16 %v760, %v759
  %v836 = vpack.c.bf16 %v762, %v761
  %v837 = vpack.c.bf16 %v764, %v763
  %v838 = vpack.c.bf16 %v766, %v765
  %v839 = vpack.c.bf16 %v768, %v767
  %v840 = vpack.c.bf16 %v770, %v769
  %v841 = vpack.c.bf16 %v772, %v771
  %v842 = vpack.c.bf16 %v774, %v773
  %v843 = vpack.c.bf16 %v776, %v775
  %v844 = vpack.c.bf16 %v778, %v777
  %v845 = vpack.c.bf16 %v780, %v779
  %v846 = vpack.c.bf16 %v782, %v781
  %v847 = vld [vmem:[%s1] sm:$0xff]
  %v848 = vld [vmem:[%s1 + $0x8] sm:$0xff]
  %v849 = vld [vmem:[%s1 + $0x10] sm:$0xff]
  %v850 = vld [vmem:[%s1 + $0x18] sm:$0xff]
  %v851 = vld [vmem:[%s1 + $0x20] sm:$0xff]
  %v852 = vld [vmem:[%s1 + $0x28] sm:$0xff]
  %v853 = vld [vmem:[%s1 + $0x30] sm:$0xff]
  %v854 = vld [vmem:[%s1 + $0x38] sm:$0xff]
  %v855 = vld [vmem:[%s1 + $0x40] sm:$0xff]
  %v856 = vld [vmem:[%s1 + $0x48] sm:$0xff]
  %v857 = vld [vmem:[%s1 + $0x50] sm:$0xff]
  %v858 = vld [vmem:[%s1 + $0x58] sm:$0xff]
  %v859 = vld [vmem:[%s1 + $0x60] sm:$0xff]
  %v860 = vld [vmem:[%s1 + $0x68] sm:$0xff]
  %v861 = vld [vmem:[%s1 + $0x70] sm:$0xff]
  %v862 = vld [vmem:[%s1 + $0x78] sm:$0xff]
  %v863 = vld [vmem:[%s1 + $0x80] sm:$0xff]
  %v864 = vld [vmem:[%s1 + $0x88] sm:$0xff]
  %v865 = vld [vmem:[%s1 + $0x90] sm:$0xff]
  %v866 = vld [vmem:[%s1 + $0x98] sm:$0xff]
  %v867 = vld [vmem:[%s1 + $0xa0] sm:$0xff]
  %v868 = vld [vmem:[%s1 + $0xa8] sm:$0xff]
  %v869 = vld [vmem:[%s1 + $0xb0] sm:$0xff]
  %v870 = vld [vmem:[%s1 + $0xb8] sm:$0xff]
  %v871 = vld [vmem:[%s1 + $0xc0] sm:$0xff]
  %v872 = vld [vmem:[%s1 + $0xc8] sm:$0xff]
  %v873 = vld [vmem:[%s1 + $0xd0] sm:$0xff]
  %v874 = vld [vmem:[%s1 + $0xd8] sm:$0xff]
  %v875 = vld [vmem:[%s1 + $0xe0] sm:$0xff]
  %v876 = vld [vmem:[%s1 + $0xe8] sm:$0xff]
  %v877 = vld [vmem:[%s1 + $0xf0] sm:$0xff]
  %v878 = vld [vmem:[%s1 + $0xf8] sm:$0xff]
  %v879 = vld [vmem:[%s1 + $0x100] sm:$0xff]
  %v880 = vld [vmem:[%s1 + $0x108] sm:$0xff]
  %v881 = vld [vmem:[%s1 + $0x110] sm:$0xff]
  %v882 = vld [vmem:[%s1 + $0x118] sm:$0xff]
  %v883 = vld [vmem:[%s1 + $0x120] sm:$0xff]
  %v884 = vld [vmem:[%s1 + $0x128] sm:$0xff]
  %v885 = vld [vmem:[%s1 + $0x130] sm:$0xff]
  %v886 = vld [vmem:[%s1 + $0x138] sm:$0xff]
  %v887 = vld [vmem:[%s1 + $0x140] sm:$0xff]
  %v888 = vld [vmem:[%s1 + $0x148] sm:$0xff]
  %v889 = vld [vmem:[%s1 + $0x150] sm:$0xff]
  %v890 = vld [vmem:[%s1 + $0x158] sm:$0xff]
  %v891 = vld [vmem:[%s1 + $0x160] sm:$0xff]
  %v892 = vld [vmem:[%s1 + $0x168] sm:$0xff]
  %v893 = vld [vmem:[%s1 + $0x170] sm:$0xff]
  %v894 = vld [vmem:[%s1 + $0x178] sm:$0xff]
  %v895 = vld [vmem:[%s1 + $0x180] sm:$0xff]
  %v896 = vld [vmem:[%s1 + $0x188] sm:$0xff]
  %v897 = vld [vmem:[%s1 + $0x190] sm:$0xff]
  %v898 = vld [vmem:[%s1 + $0x198] sm:$0xff]
  %v899 = vld [vmem:[%s1 + $0x1a0] sm:$0xff]
  %v900 = vld [vmem:[%s1 + $0x1a8] sm:$0xff]
  %v901 = vld [vmem:[%s1 + $0x1b0] sm:$0xff]
  %v902 = vld [vmem:[%s1 + $0x1b8] sm:$0xff]
  %v903 = vld [vmem:[%s1 + $0x1c0] sm:$0xff]
  %v904 = vld [vmem:[%s1 + $0x1c8] sm:$0xff]
  %v905 = vld [vmem:[%s1 + $0x1d0] sm:$0xff]
  %v906 = vld [vmem:[%s1 + $0x1d8] sm:$0xff]
  %v907 = vld [vmem:[%s1 + $0x1e0] sm:$0xff]
  %v908 = vld [vmem:[%s1 + $0x1e8] sm:$0xff]
  %v909 = vld [vmem:[%s1 + $0x1f0] sm:$0xff]
  %v910 = vld [vmem:[%s1 + $0x1f8] sm:$0xff]
  %v911 = vld [vmem:[%s2] sm:$0x3]
  %v913 = vperm.slane %v911, 0
  %v914 = vperm.slane %v911, 1
  %v981 = vunpack.c.l.b16 %v783
  %v982 = vunpack.c.h.b16 %v783
  %v983 = vunpack.c.l.b16 %v784
  %v984 = vunpack.c.h.b16 %v784
  %v985 = vunpack.c.l.b16 %v785
  %v986 = vunpack.c.h.b16 %v785
  %v987 = vunpack.c.l.b16 %v786
  %v988 = vunpack.c.h.b16 %v786
  %v989 = vunpack.c.l.b16 %v787
  %v990 = vunpack.c.h.b16 %v787
  %v991 = vunpack.c.l.b16 %v788
  %v992 = vunpack.c.h.b16 %v788
  %v993 = vunpack.c.l.b16 %v789
  %v994 = vunpack.c.h.b16 %v789
  %v995 = vunpack.c.l.b16 %v790
  %v996 = vunpack.c.h.b16 %v790
  %v997 = vunpack.c.l.b16 %v791
  %v998 = vunpack.c.h.b16 %v791
  %v999 = vunpack.c.l.b16 %v792
  %v1000 = vunpack.c.h.b16 %v792
  %v1001 = vunpack.c.l.b16 %v793
  %v1002 = vunpack.c.h.b16 %v793
  %v1003 = vunpack.c.l.b16 %v794
  %v1004 = vunpack.c.h.b16 %v794
  %v1005 = vunpack.c.l.b16 %v795
  %v1006 = vunpack.c.h.b16 %v795
  %v1007 = vunpack.c.l.b16 %v796
  %v1008 = vunpack.c.h.b16 %v796
  %v1009 = vunpack.c.l.b16 %v797
  %v1010 = vunpack.c.h.b16 %v797
  %v1011 = vunpack.c.l.b16 %v798
  %v1012 = vunpack.c.h.b16 %v798
  %v1013 = vunpack.c.l.b16 %v799
  %v1014 = vunpack.c.h.b16 %v799
  %v1015 = vunpack.c.l.b16 %v800
  %v1016 = vunpack.c.h.b16 %v800
  %v1017 = vunpack.c.l.b16 %v801
  %v1018 = vunpack.c.h.b16 %v801
  %v1019 = vunpack.c.l.b16 %v802
  %v1020 = vunpack.c.h.b16 %v802
  %v1021 = vunpack.c.l.b16 %v803
  %v1022 = vunpack.c.h.b16 %v803
  %v1023 = vunpack.c.l.b16 %v804
  %v1024 = vunpack.c.h.b16 %v804
  %v1025 = vunpack.c.l.b16 %v805
  %v1026 = vunpack.c.h.b16 %v805
  %v1027 = vunpack.c.l.b16 %v806
  %v1028 = vunpack.c.h.b16 %v806
  %v1029 = vunpack.c.l.b16 %v807
  %v1030 = vunpack.c.h.b16 %v807
  %v1031 = vunpack.c.l.b16 %v808
  %v1032 = vunpack.c.h.b16 %v808
  %v1033 = vunpack.c.l.b16 %v809
  %v1034 = vunpack.c.h.b16 %v809
  %v1035 = vunpack.c.l.b16 %v810
  %v1036 = vunpack.c.h.b16 %v810
  %v1037 = vunpack.c.l.b16 %v811
  %v1038 = vunpack.c.h.b16 %v811
  %v1039 = vunpack.c.l.b16 %v812
  %v1040 = vunpack.c.h.b16 %v812
  %v1041 = vunpack.c.l.b16 %v813
  %v1042 = vunpack.c.h.b16 %v813
  %v1043 = vunpack.c.l.b16 %v814
  %v1044 = vunpack.c.h.b16 %v814
  %v1045 = vunpack.c.l.b16 %v815
  %v1046 = vunpack.c.h.b16 %v815
  %v1047 = vunpack.c.l.b16 %v816
  %v1048 = vunpack.c.h.b16 %v816
  %v1049 = vunpack.c.l.b16 %v817
  %v1050 = vunpack.c.h.b16 %v817
  %v1051 = vunpack.c.l.b16 %v818
  %v1052 = vunpack.c.h.b16 %v818
  %v1053 = vunpack.c.l.b16 %v819
  %v1054 = vunpack.c.h.b16 %v819
  %v1055 = vunpack.c.l.b16 %v820
  %v1056 = vunpack.c.h.b16 %v820
  %v1057 = vunpack.c.l.b16 %v821
  %v1058 = vunpack.c.h.b16 %v821
  %v1059 = vunpack.c.l.b16 %v822
  %v1060 = vunpack.c.h.b16 %v822
  %v1061 = vunpack.c.l.b16 %v823
  %v1062 = vunpack.c.h.b16 %v823
  %v1063 = vunpack.c.l.b16 %v824
  %v1064 = vunpack.c.h.b16 %v824
  %v1065 = vunpack.c.l.b16 %v825
  %v1066 = vunpack.c.h.b16 %v825
  %v1067 = vunpack.c.l.b16 %v826
  %v1068 = vunpack.c.h.b16 %v826
  %v1069 = vunpack.c.l.b16 %v827
  %v1070 = vunpack.c.h.b16 %v827
  %v1071 = vunpack.c.l.b16 %v828
  %v1072 = vunpack.c.h.b16 %v828
  %v1073 = vunpack.c.l.b16 %v829
  %v1074 = vunpack.c.h.b16 %v829
  %v1075 = vunpack.c.l.b16 %v830
  %v1076 = vunpack.c.h.b16 %v830
  %v1077 = vunpack.c.l.b16 %v831
  %v1078 = vunpack.c.h.b16 %v831
  %v1079 = vunpack.c.l.b16 %v832
  %v1080 = vunpack.c.h.b16 %v832
  %v1081 = vunpack.c.l.b16 %v833
  %v1082 = vunpack.c.h.b16 %v833
  %v1083 = vunpack.c.l.b16 %v834
  %v1084 = vunpack.c.h.b16 %v834
  %v1085 = vunpack.c.l.b16 %v835
  %v1086 = vunpack.c.h.b16 %v835
  %v1087 = vunpack.c.l.b16 %v836
  %v1088 = vunpack.c.h.b16 %v836
  %v1089 = vunpack.c.l.b16 %v837
  %v1090 = vunpack.c.h.b16 %v837
  %v1091 = vunpack.c.l.b16 %v838
  %v1092 = vunpack.c.h.b16 %v838
  %v1093 = vunpack.c.l.b16 %v839
  %v1094 = vunpack.c.h.b16 %v839
  %v1095 = vunpack.c.l.b16 %v840
  %v1096 = vunpack.c.h.b16 %v840
  %v1097 = vunpack.c.l.b16 %v841
  %v1098 = vunpack.c.h.b16 %v841
  %v1099 = vunpack.c.l.b16 %v842
  %v1100 = vunpack.c.h.b16 %v842
  %v1101 = vunpack.c.l.b16 %v843
  %v1102 = vunpack.c.h.b16 %v843
  %v1103 = vunpack.c.l.b16 %v844
  %v1104 = vunpack.c.h.b16 %v844
  %v1105 = vunpack.c.l.b16 %v845
  %v1106 = vunpack.c.h.b16 %v845
  %v1107 = vunpack.c.l.b16 %v846
  %v1108 = vunpack.c.h.b16 %v846
  %v1109 = vlaneseq
  %v1110 = vand.u32 %v1109, 127
  %v1111 = vperm.slane %v981, %v1110
  %v1112 = vadd.s32 %v1110, 4294967288
  %v1113 = vperm.slane %v982, %v1112
  %vm1114 = vcmask 130112
  %v1115 = vsel %vm1114, %v1113, %v1111
  %v1116 = vadd.s32 %v1110, 4294967280
  %v1117 = vperm.slane %v983, %v1116
  %vm1118 = vcmask 195712
  %v1119 = vsel %vm1118, %v1117, %v1115
  %v1120 = vadd.s32 %v1110, 4294967272
  %v1121 = vperm.slane %v984, %v1120
  %vm1122 = vcmask 261312
  %v1123 = vsel %vm1122, %v1121, %v1119
  %v1124 = vadd.s32 %v1110, 4294967264
  %v1125 = vperm.slane %v985, %v1124
  %vm1126 = vcmask 326912
  %v1127 = vsel %vm1126, %v1125, %v1123
  %v1128 = vadd.s32 %v1110, 4294967256
  %v1129 = vperm.slane %v986, %v1128
  %vm1130 = vcmask 392512
  %v1131 = vsel %vm1130, %v1129, %v1127
  %v1132 = vadd.s32 %v1110, 4294967248
  %v1133 = vperm.slane %v987, %v1132
  %vm1134 = vcmask 458112
  %v1135 = vsel %vm1134, %v1133, %v1131
  %v1136 = vadd.s32 %v1110, 4294967240
  %v1137 = vperm.slane %v988, %v1136
  %vm1138 = vcmask 523712
  %v1139 = vsel %vm1138, %v1137, %v1135
  %v1140 = vadd.s32 %v1110, 4294967232
  %v1141 = vperm.slane %v989, %v1140
  %vm1142 = vcmask 589312
  %v1143 = vsel %vm1142, %v1141, %v1139
  %v1144 = vadd.s32 %v1110, 4294967224
  %v1145 = vperm.slane %v990, %v1144
  %vm1146 = vcmask 654912
  %v1147 = vsel %vm1146, %v1145, %v1143
  %v1148 = vadd.s32 %v1110, 4294967216
  %v1149 = vperm.slane %v991, %v1148
  %vm1150 = vcmask 720512
  %v1151 = vsel %vm1150, %v1149, %v1147
  %v1152 = vadd.s32 %v1110, 4294967208
  %v1153 = vperm.slane %v992, %v1152
  %vm1154 = vcmask 786112
  %v1155 = vsel %vm1154, %v1153, %v1151
  %v1156 = vadd.s32 %v1110, 4294967200
  %v1157 = vperm.slane %v993, %v1156
  %vm1158 = vcmask 851712
  %v1159 = vsel %vm1158, %v1157, %v1155
  %v1160 = vadd.s32 %v1110, 4294967192
  %v1161 = vperm.slane %v994, %v1160
  %vm1162 = vcmask 917312
  %v1163 = vsel %vm1162, %v1161, %v1159
  %v1164 = vadd.s32 %v1110, 4294967184
  %v1165 = vperm.slane %v995, %v1164
  %vm1166 = vcmask 982912
  %v1167 = vsel %vm1166, %v1165, %v1163
  %v1168 = vadd.s32 %v1110, 4294967176
  %v1169 = vperm.slane %v996, %v1168
  %vm1170 = vcmask 1048512
  %v1171 = vsel %vm1170, %v1169, %v1167
  %v1172 = vperm.slane %v997, %v1110
  %v1173 = vperm.slane %v998, %v1112
  %v1174 = vsel %vm1114, %v1173, %v1172
  %v1175 = vperm.slane %v999, %v1116
  %v1176 = vsel %vm1118, %v1175, %v1174
  %v1177 = vperm.slane %v1000, %v1120
  %v1178 = vsel %vm1122, %v1177, %v1176
  %v1179 = vperm.slane %v1001, %v1124
  %v1180 = vsel %vm1126, %v1179, %v1178
  %v1181 = vperm.slane %v1002, %v1128
  %v1182 = vsel %vm1130, %v1181, %v1180
  %v1183 = vperm.slane %v1003, %v1132
  %v1184 = vsel %vm1134, %v1183, %v1182
  %v1185 = vperm.slane %v1004, %v1136
  %v1186 = vsel %vm1138, %v1185, %v1184
  %v1187 = vperm.slane %v1005, %v1140
  %v1188 = vsel %vm1142, %v1187, %v1186
  %v1189 = vperm.slane %v1006, %v1144
  %v1190 = vsel %vm1146, %v1189, %v1188
  %v1191 = vperm.slane %v1007, %v1148
  %v1192 = vsel %vm1150, %v1191, %v1190
  %v1193 = vperm.slane %v1008, %v1152
  %v1194 = vsel %vm1154, %v1193, %v1192
  %v1195 = vperm.slane %v1009, %v1156
  %v1196 = vsel %vm1158, %v1195, %v1194
  %v1197 = vperm.slane %v1010, %v1160
  %v1198 = vsel %vm1162, %v1197, %v1196
  %v1199 = vperm.slane %v1011, %v1164
  %v1200 = vsel %vm1166, %v1199, %v1198
  %v1201 = vperm.slane %v1012, %v1168
  %v1202 = vsel %vm1170, %v1201, %v1200
  %v1203 = vperm.slane %v1013, %v1110
  %v1204 = vperm.slane %v1014, %v1112
  %v1205 = vsel %vm1114, %v1204, %v1203
  %v1206 = vperm.slane %v1015, %v1116
  %v1207 = vsel %vm1118, %v1206, %v1205
  %v1208 = vperm.slane %v1016, %v1120
  %v1209 = vsel %vm1122, %v1208, %v1207
  %v1210 = vperm.slane %v1017, %v1124
  %v1211 = vsel %vm1126, %v1210, %v1209
  %v1212 = vperm.slane %v1018, %v1128
  %v1213 = vsel %vm1130, %v1212, %v1211
  %v1214 = vperm.slane %v1019, %v1132
  %v1215 = vsel %vm1134, %v1214, %v1213
  %v1216 = vperm.slane %v1020, %v1136
  %v1217 = vsel %vm1138, %v1216, %v1215
  %v1218 = vperm.slane %v1021, %v1140
  %v1219 = vsel %vm1142, %v1218, %v1217
  %v1220 = vperm.slane %v1022, %v1144
  %v1221 = vsel %vm1146, %v1220, %v1219
  %v1222 = vperm.slane %v1023, %v1148
  %v1223 = vsel %vm1150, %v1222, %v1221
  %v1224 = vperm.slane %v1024, %v1152
  %v1225 = vsel %vm1154, %v1224, %v1223
  %v1226 = vperm.slane %v1025, %v1156
  %v1227 = vsel %vm1158, %v1226, %v1225
  %v1228 = vperm.slane %v1026, %v1160
  %v1229 = vsel %vm1162, %v1228, %v1227
  %v1230 = vperm.slane %v1027, %v1164
  %v1231 = vsel %vm1166, %v1230, %v1229
  %v1232 = vperm.slane %v1028, %v1168
  %v1233 = vsel %vm1170, %v1232, %v1231
  %v1234 = vperm.slane %v1029, %v1110
  %v1235 = vperm.slane %v1030, %v1112
  %v1236 = vsel %vm1114, %v1235, %v1234
  %v1237 = vperm.slane %v1031, %v1116
  %v1238 = vsel %vm1118, %v1237, %v1236
  %v1239 = vperm.slane %v1032, %v1120
  %v1240 = vsel %vm1122, %v1239, %v1238
  %v1241 = vperm.slane %v1033, %v1124
  %v1242 = vsel %vm1126, %v1241, %v1240
  %v1243 = vperm.slane %v1034, %v1128
  %v1244 = vsel %vm1130, %v1243, %v1242
  %v1245 = vperm.slane %v1035, %v1132
  %v1246 = vsel %vm1134, %v1245, %v1244
  %v1247 = vperm.slane %v1036, %v1136
  %v1248 = vsel %vm1138, %v1247, %v1246
  %v1249 = vperm.slane %v1037, %v1140
  %v1250 = vsel %vm1142, %v1249, %v1248
  %v1251 = vperm.slane %v1038, %v1144
  %v1252 = vsel %vm1146, %v1251, %v1250
  %v1253 = vperm.slane %v1039, %v1148
  %v1254 = vsel %vm1150, %v1253, %v1252
  %v1255 = vperm.slane %v1040, %v1152
  %v1256 = vsel %vm1154, %v1255, %v1254
  %v1257 = vperm.slane %v1041, %v1156
  %v1258 = vsel %vm1158, %v1257, %v1256
  %v1259 = vperm.slane %v1042, %v1160
  %v1260 = vsel %vm1162, %v1259, %v1258
  %v1261 = vperm.slane %v1043, %v1164
  %v1262 = vsel %vm1166, %v1261, %v1260
  %v1263 = vperm.slane %v1044, %v1168
  %v1264 = vsel %vm1170, %v1263, %v1262
  %v1265 = vperm.slane %v1045, %v1110
  %v1266 = vperm.slane %v1046, %v1112
  %v1267 = vsel %vm1114, %v1266, %v1265
  %v1268 = vperm.slane %v1047, %v1116
  %v1269 = vsel %vm1118, %v1268, %v1267
  %v1270 = vperm.slane %v1048, %v1120
  %v1271 = vsel %vm1122, %v1270, %v1269
  %v1272 = vperm.slane %v1049, %v1124
  %v1273 = vsel %vm1126, %v1272, %v1271
  %v1274 = vperm.slane %v1050, %v1128
  %v1275 = vsel %vm1130, %v1274, %v1273
  %v1276 = vperm.slane %v1051, %v1132
  %v1277 = vsel %vm1134, %v1276, %v1275
  %v1278 = vperm.slane %v1052, %v1136
  %v1279 = vsel %vm1138, %v1278, %v1277
  %v1280 = vperm.slane %v1053, %v1140
  %v1281 = vsel %vm1142, %v1280, %v1279
  %v1282 = vperm.slane %v1054, %v1144
  %v1283 = vsel %vm1146, %v1282, %v1281
  %v1284 = vperm.slane %v1055, %v1148
  %v1285 = vsel %vm1150, %v1284, %v1283
  %v1286 = vperm.slane %v1056, %v1152
  %v1287 = vsel %vm1154, %v1286, %v1285
  %v1288 = vperm.slane %v1057, %v1156
  %v1289 = vsel %vm1158, %v1288, %v1287
  %v1290 = vperm.slane %v1058, %v1160
  %v1291 = vsel %vm1162, %v1290, %v1289
  %v1292 = vperm.slane %v1059, %v1164
  %v1293 = vsel %vm1166, %v1292, %v1291
  %v1294 = vperm.slane %v1060, %v1168
  %v1295 = vsel %vm1170, %v1294, %v1293
  %v1296 = vperm.slane %v1061, %v1110
  %v1297 = vperm.slane %v1062, %v1112
  %v1298 = vsel %vm1114, %v1297, %v1296
  %v1299 = vperm.slane %v1063, %v1116
  %v1300 = vsel %vm1118, %v1299, %v1298
  %v1301 = vperm.slane %v1064, %v1120
  %v1302 = vsel %vm1122, %v1301, %v1300
  %v1303 = vperm.slane %v1065, %v1124
  %v1304 = vsel %vm1126, %v1303, %v1302
  %v1305 = vperm.slane %v1066, %v1128
  %v1306 = vsel %vm1130, %v1305, %v1304
  %v1307 = vperm.slane %v1067, %v1132
  %v1308 = vsel %vm1134, %v1307, %v1306
  %v1309 = vperm.slane %v1068, %v1136
  %v1310 = vsel %vm1138, %v1309, %v1308
  %v1311 = vperm.slane %v1069, %v1140
  %v1312 = vsel %vm1142, %v1311, %v1310
  %v1313 = vperm.slane %v1070, %v1144
  %v1314 = vsel %vm1146, %v1313, %v1312
  %v1315 = vperm.slane %v1071, %v1148
  %v1316 = vsel %vm1150, %v1315, %v1314
  %v1317 = vperm.slane %v1072, %v1152
  %v1318 = vsel %vm1154, %v1317, %v1316
  %v1319 = vperm.slane %v1073, %v1156
  %v1320 = vsel %vm1158, %v1319, %v1318
  %v1321 = vperm.slane %v1074, %v1160
  %v1322 = vsel %vm1162, %v1321, %v1320
  %v1323 = vperm.slane %v1075, %v1164
  %v1324 = vsel %vm1166, %v1323, %v1322
  %v1325 = vperm.slane %v1076, %v1168
  %v1326 = vsel %vm1170, %v1325, %v1324
  %v1327 = vperm.slane %v1077, %v1110
  %v1328 = vperm.slane %v1078, %v1112
  %v1329 = vsel %vm1114, %v1328, %v1327
  %v1330 = vperm.slane %v1079, %v1116
  %v1331 = vsel %vm1118, %v1330, %v1329
  %v1332 = vperm.slane %v1080, %v1120
  %v1333 = vsel %vm1122, %v1332, %v1331
  %v1334 = vperm.slane %v1081, %v1124
  %v1335 = vsel %vm1126, %v1334, %v1333
  %v1336 = vperm.slane %v1082, %v1128
  %v1337 = vsel %vm1130, %v1336, %v1335
  %v1338 = vperm.slane %v1083, %v1132
  %v1339 = vsel %vm1134, %v1338, %v1337
  %v1340 = vperm.slane %v1084, %v1136
  %v1341 = vsel %vm1138, %v1340, %v1339
  %v1342 = vperm.slane %v1085, %v1140
  %v1343 = vsel %vm1142, %v1342, %v1341
  %v1344 = vperm.slane %v1086, %v1144
  %v1345 = vsel %vm1146, %v1344, %v1343
  %v1346 = vperm.slane %v1087, %v1148
  %v1347 = vsel %vm1150, %v1346, %v1345
  %v1348 = vperm.slane %v1088, %v1152
  %v1349 = vsel %vm1154, %v1348, %v1347
  %v1350 = vperm.slane %v1089, %v1156
  %v1351 = vsel %vm1158, %v1350, %v1349
  %v1352 = vperm.slane %v1090, %v1160
  %v1353 = vsel %vm1162, %v1352, %v1351
  %v1354 = vperm.slane %v1091, %v1164
  %v1355 = vsel %vm1166, %v1354, %v1353
  %v1356 = vperm.slane %v1092, %v1168
  %v1357 = vsel %vm1170, %v1356, %v1355
  %v1358 = vperm.slane %v1093, %v1110
  %v1359 = vperm.slane %v1094, %v1112
  %v1360 = vsel %vm1114, %v1359, %v1358
  %v1361 = vperm.slane %v1095, %v1116
  %v1362 = vsel %vm1118, %v1361, %v1360
  %v1363 = vperm.slane %v1096, %v1120
  %v1364 = vsel %vm1122, %v1363, %v1362
  %v1365 = vperm.slane %v1097, %v1124
  %v1366 = vsel %vm1126, %v1365, %v1364
  %v1367 = vperm.slane %v1098, %v1128
  %v1368 = vsel %vm1130, %v1367, %v1366
  %v1369 = vperm.slane %v1099, %v1132
  %v1370 = vsel %vm1134, %v1369, %v1368
  %v1371 = vperm.slane %v1100, %v1136
  %v1372 = vsel %vm1138, %v1371, %v1370
  %v1373 = vperm.slane %v1101, %v1140
  %v1374 = vsel %vm1142, %v1373, %v1372
  %v1375 = vperm.slane %v1102, %v1144
  %v1376 = vsel %vm1146, %v1375, %v1374
  %v1377 = vperm.slane %v1103, %v1148
  %v1378 = vsel %vm1150, %v1377, %v1376
  %v1379 = vperm.slane %v1104, %v1152
  %v1380 = vsel %vm1154, %v1379, %v1378
  %v1381 = vperm.slane %v1105, %v1156
  %v1382 = vsel %vm1158, %v1381, %v1380
  %v1383 = vperm.slane %v1106, %v1160
  %v1384 = vsel %vm1162, %v1383, %v1382
  %v1385 = vperm.slane %v1107, %v1164
  %v1386 = vsel %vm1166, %v1385, %v1384
  %v1387 = vperm.slane %v1108, %v1168
  %v1388 = vsel %vm1170, %v1387, %v1386
  %vm1389 = vcmask 1041409
  %v1390 = vsel %vm1389, %v1295, %v1171
  %v1391 = vsel %vm1389, %v1326, %v1202
  %v1392 = vsel %vm1389, %v1357, %v1233
  %v1393 = vsel %vm1389, %v1388, %v1264
  %v1394 = vpack.c.b16 %v1390, %v1390
  %v1395 = vpack.c.b16 %v1391, %v1391
  %v1396 = vpack.c.b16 %v1392, %v1392
  %v1397 = vpack.c.b16 %v1393, %v1393
  %v1466 = vunpack.c.l.b16 %v847
  %v1467 = vunpack.c.h.b16 %v847
  %v1468 = vunpack.c.l.b16 %v848
  %v1469 = vunpack.c.h.b16 %v848
  %v1470 = vunpack.c.l.b16 %v849
  %v1471 = vunpack.c.h.b16 %v849
  %v1472 = vunpack.c.l.b16 %v850
  %v1473 = vunpack.c.h.b16 %v850
  %v1474 = vunpack.c.l.b16 %v851
  %v1475 = vunpack.c.h.b16 %v851
  %v1476 = vunpack.c.l.b16 %v852
  %v1477 = vunpack.c.h.b16 %v852
  %v1478 = vunpack.c.l.b16 %v853
  %v1479 = vunpack.c.h.b16 %v853
  %v1480 = vunpack.c.l.b16 %v854
  %v1481 = vunpack.c.h.b16 %v854
  %v1482 = vunpack.c.l.b16 %v855
  %v1483 = vunpack.c.h.b16 %v855
  %v1484 = vunpack.c.l.b16 %v856
  %v1485 = vunpack.c.h.b16 %v856
  %v1486 = vunpack.c.l.b16 %v857
  %v1487 = vunpack.c.h.b16 %v857
  %v1488 = vunpack.c.l.b16 %v858
  %v1489 = vunpack.c.h.b16 %v858
  %v1490 = vunpack.c.l.b16 %v859
  %v1491 = vunpack.c.h.b16 %v859
  %v1492 = vunpack.c.l.b16 %v860
  %v1493 = vunpack.c.h.b16 %v860
  %v1494 = vunpack.c.l.b16 %v861
  %v1495 = vunpack.c.h.b16 %v861
  %v1496 = vunpack.c.l.b16 %v862
  %v1497 = vunpack.c.h.b16 %v862
  %v1498 = vunpack.c.l.b16 %v863
  %v1499 = vunpack.c.h.b16 %v863
  %v1500 = vunpack.c.l.b16 %v864
  %v1501 = vunpack.c.h.b16 %v864
  %v1502 = vunpack.c.l.b16 %v865
  %v1503 = vunpack.c.h.b16 %v865
  %v1504 = vunpack.c.l.b16 %v866
  %v1505 = vunpack.c.h.b16 %v866
  %v1506 = vunpack.c.l.b16 %v867
  %v1507 = vunpack.c.h.b16 %v867
  %v1508 = vunpack.c.l.b16 %v868
  %v1509 = vunpack.c.h.b16 %v868
  %v1510 = vunpack.c.l.b16 %v869
  %v1511 = vunpack.c.h.b16 %v869
  %v1512 = vunpack.c.l.b16 %v870
  %v1513 = vunpack.c.h.b16 %v870
  %v1514 = vunpack.c.l.b16 %v871
  %v1515 = vunpack.c.h.b16 %v871
  %v1516 = vunpack.c.l.b16 %v872
  %v1517 = vunpack.c.h.b16 %v872
  %v1518 = vunpack.c.l.b16 %v873
  %v1519 = vunpack.c.h.b16 %v873
  %v1520 = vunpack.c.l.b16 %v874
  %v1521 = vunpack.c.h.b16 %v874
  %v1522 = vunpack.c.l.b16 %v875
  %v1523 = vunpack.c.h.b16 %v875
  %v1524 = vunpack.c.l.b16 %v876
  %v1525 = vunpack.c.h.b16 %v876
  %v1526 = vunpack.c.l.b16 %v877
  %v1527 = vunpack.c.h.b16 %v877
  %v1528 = vunpack.c.l.b16 %v878
  %v1529 = vunpack.c.h.b16 %v878
  %v1530 = vunpack.c.l.b16 %v879
  %v1531 = vunpack.c.h.b16 %v879
  %v1532 = vunpack.c.l.b16 %v880
  %v1533 = vunpack.c.h.b16 %v880
  %v1534 = vunpack.c.l.b16 %v881
  %v1535 = vunpack.c.h.b16 %v881
  %v1536 = vunpack.c.l.b16 %v882
  %v1537 = vunpack.c.h.b16 %v882
  %v1538 = vunpack.c.l.b16 %v883
  %v1539 = vunpack.c.h.b16 %v883
  %v1540 = vunpack.c.l.b16 %v884
  %v1541 = vunpack.c.h.b16 %v884
  %v1542 = vunpack.c.l.b16 %v885
  %v1543 = vunpack.c.h.b16 %v885
  %v1544 = vunpack.c.l.b16 %v886
  %v1545 = vunpack.c.h.b16 %v886
  %v1546 = vunpack.c.l.b16 %v887
  %v1547 = vunpack.c.h.b16 %v887
  %v1548 = vunpack.c.l.b16 %v888
  %v1549 = vunpack.c.h.b16 %v888
  %v1550 = vunpack.c.l.b16 %v889
  %v1551 = vunpack.c.h.b16 %v889
  %v1552 = vunpack.c.l.b16 %v890
  %v1553 = vunpack.c.h.b16 %v890
  %v1554 = vunpack.c.l.b16 %v891
  %v1555 = vunpack.c.h.b16 %v891
  %v1556 = vunpack.c.l.b16 %v892
  %v1557 = vunpack.c.h.b16 %v892
  %v1558 = vunpack.c.l.b16 %v893
  %v1559 = vunpack.c.h.b16 %v893
  %v1560 = vunpack.c.l.b16 %v894
  %v1561 = vunpack.c.h.b16 %v894
  %v1562 = vunpack.c.l.b16 %v895
  %v1563 = vunpack.c.h.b16 %v895
  %v1564 = vunpack.c.l.b16 %v896
  %v1565 = vunpack.c.h.b16 %v896
  %v1566 = vunpack.c.l.b16 %v897
  %v1567 = vunpack.c.h.b16 %v897
  %v1568 = vunpack.c.l.b16 %v898
  %v1569 = vunpack.c.h.b16 %v898
  %v1570 = vunpack.c.l.b16 %v899
  %v1571 = vunpack.c.h.b16 %v899
  %v1572 = vunpack.c.l.b16 %v900
  %v1573 = vunpack.c.h.b16 %v900
  %v1574 = vunpack.c.l.b16 %v901
  %v1575 = vunpack.c.h.b16 %v901
  %v1576 = vunpack.c.l.b16 %v902
  %v1577 = vunpack.c.h.b16 %v902
  %v1578 = vunpack.c.l.b16 %v903
  %v1579 = vunpack.c.h.b16 %v903
  %v1580 = vunpack.c.l.b16 %v904
  %v1581 = vunpack.c.h.b16 %v904
  %v1582 = vunpack.c.l.b16 %v905
  %v1583 = vunpack.c.h.b16 %v905
  %v1584 = vunpack.c.l.b16 %v906
  %v1585 = vunpack.c.h.b16 %v906
  %v1586 = vunpack.c.l.b16 %v907
  %v1587 = vunpack.c.h.b16 %v907
  %v1588 = vunpack.c.l.b16 %v908
  %v1589 = vunpack.c.h.b16 %v908
  %v1590 = vunpack.c.l.b16 %v909
  %v1591 = vunpack.c.h.b16 %v909
  %v1592 = vunpack.c.l.b16 %v910
  %v1593 = vunpack.c.h.b16 %v910
  %v1594 = vpack.c.b16 %v1468, %v1466
  %v1595 = vpack.c.b16 %v1469, %v1467
  %v1596 = vpack.c.b16 %v1472, %v1470
  %v1597 = vpack.c.b16 %v1473, %v1471
  %v1598 = vpack.c.b16 %v1476, %v1474
  %v1599 = vpack.c.b16 %v1477, %v1475
  %v1600 = vpack.c.b16 %v1480, %v1478
  %v1601 = vpack.c.b16 %v1481, %v1479
  %v1602 = vpack.c.b16 %v1484, %v1482
  %v1603 = vpack.c.b16 %v1485, %v1483
  %v1604 = vpack.c.b16 %v1488, %v1486
  %v1605 = vpack.c.b16 %v1489, %v1487
  %v1606 = vpack.c.b16 %v1492, %v1490
  %v1607 = vpack.c.b16 %v1493, %v1491
  %v1608 = vpack.c.b16 %v1496, %v1494
  %v1609 = vpack.c.b16 %v1497, %v1495
  %v1610 = vpack.c.b16 %v1500, %v1498
  %v1611 = vpack.c.b16 %v1501, %v1499
  %v1612 = vpack.c.b16 %v1504, %v1502
  %v1613 = vpack.c.b16 %v1505, %v1503
  %v1614 = vpack.c.b16 %v1508, %v1506
  %v1615 = vpack.c.b16 %v1509, %v1507
  %v1616 = vpack.c.b16 %v1512, %v1510
  %v1617 = vpack.c.b16 %v1513, %v1511
  %v1618 = vpack.c.b16 %v1516, %v1514
  %v1619 = vpack.c.b16 %v1517, %v1515
  %v1620 = vpack.c.b16 %v1520, %v1518
  %v1621 = vpack.c.b16 %v1521, %v1519
  %v1622 = vpack.c.b16 %v1524, %v1522
  %v1623 = vpack.c.b16 %v1525, %v1523
  %v1624 = vpack.c.b16 %v1528, %v1526
  %v1625 = vpack.c.b16 %v1529, %v1527
  %v1626 = vpack.c.b16 %v1532, %v1530
  %v1627 = vpack.c.b16 %v1533, %v1531
  %v1628 = vpack.c.b16 %v1536, %v1534
  %v1629 = vpack.c.b16 %v1537, %v1535
  %v1630 = vpack.c.b16 %v1540, %v1538
  %v1631 = vpack.c.b16 %v1541, %v1539
  %v1632 = vpack.c.b16 %v1544, %v1542
  %v1633 = vpack.c.b16 %v1545, %v1543
  %v1634 = vpack.c.b16 %v1548, %v1546
  %v1635 = vpack.c.b16 %v1549, %v1547
  %v1636 = vpack.c.b16 %v1552, %v1550
  %v1637 = vpack.c.b16 %v1553, %v1551
  %v1638 = vpack.c.b16 %v1556, %v1554
  %v1639 = vpack.c.b16 %v1557, %v1555
  %v1640 = vpack.c.b16 %v1560, %v1558
  %v1641 = vpack.c.b16 %v1561, %v1559
  %v1642 = vpack.c.b16 %v1564, %v1562
  %v1643 = vpack.c.b16 %v1565, %v1563
  %v1644 = vpack.c.b16 %v1568, %v1566
  %v1645 = vpack.c.b16 %v1569, %v1567
  %v1646 = vpack.c.b16 %v1572, %v1570
  %v1647 = vpack.c.b16 %v1573, %v1571
  %v1648 = vpack.c.b16 %v1576, %v1574
  %v1649 = vpack.c.b16 %v1577, %v1575
  %v1650 = vpack.c.b16 %v1580, %v1578
  %v1651 = vpack.c.b16 %v1581, %v1579
  %v1652 = vpack.c.b16 %v1584, %v1582
  %v1653 = vpack.c.b16 %v1585, %v1583
  %v1654 = vpack.c.b16 %v1588, %v1586
  %v1655 = vpack.c.b16 %v1589, %v1587
  %v1656 = vpack.c.b16 %v1592, %v1590
  %v1657 = vpack.c.b16 %v1593, %v1591
  %1722 = vmatpush.bf16.msra.mxu0 %v1608
  %1723 = vmatpush.bf16.msra.mxu0 %v1606
  %1724 = vmatpush.bf16.msra.mxu0 %v1604
  %1725 = vmatpush.bf16.msra.mxu0 %v1602
  %1726 = vmatpush.bf16.msra.mxu0 %v1600
  %1727 = vmatpush.bf16.msra.mxu0 %v1598
  %1728 = vmatpush.bf16.msra.mxu0 %v1596
  %1729 = vmatpush.bf16.msra.mxu0 %v1594
  %1730 = vmatmul.bf16.gmra.mxu0 %v1394
  %v1731 = vpop.f32.mrf.mxu0
  %v1732 = vadd.f32 %v913, %v1731
  %v1733 = vpop.f32.mrf.mxu0
  %1734 = vdwg.mxu0
  %1735 = vmatpush.bf16.msra.mxu0 %v1624
  %1736 = vmatpush.bf16.msra.mxu0 %v1622
  %1737 = vmatpush.bf16.msra.mxu0 %v1620
  %1738 = vmatpush.bf16.msra.mxu0 %v1618
  %1739 = vmatpush.bf16.msra.mxu0 %v1616
  %1740 = vmatpush.bf16.msra.mxu0 %v1614
  %1741 = vmatpush.bf16.msra.mxu0 %v1612
  %1742 = vmatpush.bf16.msra.mxu0 %v1610
  %1743 = vmatmul.bf16.gmra.mxu0 %v1395
  %v1744 = vpop.f32.mrf.mxu0
  %v1745 = vadd.f32 %v1732, %v1744
  %v1746 = vpop.f32.mrf.mxu0
  %1747 = vdwg.mxu0
  %1748 = vmatpush.bf16.msra.mxu0 %v1640
  %1749 = vmatpush.bf16.msra.mxu0 %v1638
  %1750 = vmatpush.bf16.msra.mxu0 %v1636
  %1751 = vmatpush.bf16.msra.mxu0 %v1634
  %1752 = vmatpush.bf16.msra.mxu0 %v1632
  %1753 = vmatpush.bf16.msra.mxu0 %v1630
  %1754 = vmatpush.bf16.msra.mxu0 %v1628
  %1755 = vmatpush.bf16.msra.mxu0 %v1626
  %1756 = vmatmul.bf16.gmra.mxu0 %v1396
  %v1757 = vpop.f32.mrf.mxu0
  %v1758 = vadd.f32 %v1745, %v1757
  %v1759 = vpop.f32.mrf.mxu0
  %1760 = vdwg.mxu0
  %1761 = vmatpush.bf16.msra.mxu0 %v1656
  %1762 = vmatpush.bf16.msra.mxu0 %v1654
  %1763 = vmatpush.bf16.msra.mxu0 %v1652
  %1764 = vmatpush.bf16.msra.mxu0 %v1650
  %1765 = vmatpush.bf16.msra.mxu0 %v1648
  %1766 = vmatpush.bf16.msra.mxu0 %v1646
  %1767 = vmatpush.bf16.msra.mxu0 %v1644
  %1768 = vmatpush.bf16.msra.mxu0 %v1642
  %1769 = vmatmul.bf16.gmra.mxu0 %v1397
  %v1770 = vpop.f32.mrf.mxu0
  %v1771 = vadd.f32 %v1758, %v1770
  %v1772 = vpop.f32.mrf.mxu0
  %1773 = vdwg.mxu0
  %1774 = vmatpush.bf16.msra.mxu0 %v1609
  %1775 = vmatpush.bf16.msra.mxu0 %v1607
  %1776 = vmatpush.bf16.msra.mxu0 %v1605
  %1777 = vmatpush.bf16.msra.mxu0 %v1603
  %1778 = vmatpush.bf16.msra.mxu0 %v1601
  %1779 = vmatpush.bf16.msra.mxu0 %v1599
  %1780 = vmatpush.bf16.msra.mxu0 %v1597
  %1781 = vmatpush.bf16.msra.mxu0 %v1595
  %1782 = vmatmul.bf16.gmra.mxu0 %v1394
  %v1783 = vpop.f32.mrf.mxu0
  %v1784 = vadd.f32 %v914, %v1783
  %v1785 = vpop.f32.mrf.mxu0
  %1786 = vdwg.mxu0
  %1787 = vmatpush.bf16.msra.mxu0 %v1625
  %1788 = vmatpush.bf16.msra.mxu0 %v1623
  %1789 = vmatpush.bf16.msra.mxu0 %v1621
  %1790 = vmatpush.bf16.msra.mxu0 %v1619
  %1791 = vmatpush.bf16.msra.mxu0 %v1617
  %1792 = vmatpush.bf16.msra.mxu0 %v1615
  %1793 = vmatpush.bf16.msra.mxu0 %v1613
  %1794 = vmatpush.bf16.msra.mxu0 %v1611
  %1795 = vmatmul.bf16.gmra.mxu0 %v1395
  %v1796 = vpop.f32.mrf.mxu0
  %v1797 = vadd.f32 %v1784, %v1796
  %v1798 = vpop.f32.mrf.mxu0
  %1799 = vdwg.mxu0
  %1800 = vmatpush.bf16.msra.mxu0 %v1641
  %1801 = vmatpush.bf16.msra.mxu0 %v1639
  %1802 = vmatpush.bf16.msra.mxu0 %v1637
  %1803 = vmatpush.bf16.msra.mxu0 %v1635
  %1804 = vmatpush.bf16.msra.mxu0 %v1633
  %1805 = vmatpush.bf16.msra.mxu0 %v1631
  %1806 = vmatpush.bf16.msra.mxu0 %v1629
  %1807 = vmatpush.bf16.msra.mxu0 %v1627
  %1808 = vmatmul.bf16.gmra.mxu0 %v1396
  %v1809 = vpop.f32.mrf.mxu0
  %v1810 = vadd.f32 %v1797, %v1809
  %v1811 = vpop.f32.mrf.mxu0
  %1812 = vdwg.mxu0
  %1813 = vmatpush.bf16.msra.mxu0 %v1657
  %1814 = vmatpush.bf16.msra.mxu0 %v1655
  %1815 = vmatpush.bf16.msra.mxu0 %v1653
  %1816 = vmatpush.bf16.msra.mxu0 %v1651
  %1817 = vmatpush.bf16.msra.mxu0 %v1649
  %1818 = vmatpush.bf16.msra.mxu0 %v1647
  %1819 = vmatpush.bf16.msra.mxu0 %v1645
  %1820 = vmatpush.bf16.msra.mxu0 %v1643
  %1821 = vmatmul.bf16.gmra.mxu0 %v1397
  %v1822 = vpop.f32.mrf.mxu0
  %v1823 = vadd.f32 %v1810, %v1822
  %v1824 = vpop.f32.mrf.mxu0
  %1825 = vdwg.mxu0
  %v1828 = vrot.slane %v1823, 6
  %vm1829 = vcmask 1041408
  %v1830 = vsel %vm1829, %v1771, %v1828
  %1832 = vst [vmem:[%s3] sm:$0xf] %v1830
  // Predicated region
  $region14: #{forward.1} parent=0 // pred_check
    _
  $region15: #{forward.1} parent=0 // pred_check_branch
    %1834 = sbr.rel (0) target = $region17
  $region16: #{forward.1} parent=0 // pred_region
    _
  $region17: #{forward.1} parent=0 // pred_fallthru
    _
  // Predicated region
  $region18: #{forward.1} parent=0 // pred_check
    _
  $region19: #{forward.1} parent=0 // pred_check_branch
    %1836 = sbr.rel (0) target = $region21
  $region20: #{forward.1} parent=0 // pred_region
    _
  $region21: #{forward.1} parent=0 // pred_fallthru
    _

</llo_original>
